<compile_context>
chip_gen: v6e
topology: v6e:2x2x1
jax: 0.10.0
libtpu: 0.0.40
codegen_flags: <defaults>
</compile_context>

<pallas_src>
import functools

import numpy as np
import jax
import jax.numpy as jnp
from jax.experimental import pallas as pl
from jax.experimental.pallas import tpu as pltpu

_EPS = 1e-5


# ----------------------------------------------------------------------------
# Parameter setup (plain numpy glue, runs once outside the kernel)
# ----------------------------------------------------------------------------
def _axis_interp_matrix(in_len, out_len):
    """Rows of bilinear x2 upsample (align_corners=True) followed by the F.pad
    placement so the axis length becomes `out_len` (pad_lo = diff // 2)."""
    up_len = 2 * in_len
    diff = out_len - up_len
    pad_lo = diff // 2
    a = np.zeros((out_len, in_len), dtype=np.float32)
    scale = (in_len - 1) / (up_len - 1) if up_len > 1 else 0.0
    for o in range(out_len):
        u = o - pad_lo
        if 0 <= u < up_len:
            src = u * scale
            lo = int(np.floor(src))
            hi = min(lo + 1, in_len - 1)
            w = src - lo
            a[o, lo] += 1.0 - w
            a[o, hi] += w
    return a


def build_up_matrix_padded_flat(H1, W1, H2, W2):
    """(H1*W1, Hp*Wp) matrix: bilinear x2 upsample (align_corners=True) + F.pad
    to (H2, W2) + the 3x3 conv's 1-pixel zero border, flattened row-major so the
    matmul output lands directly in the kernel's padded-flat layout."""
    Ah = _axis_interp_matrix(H1, H2)           # (H2, H1)
    Aw = _axis_interp_matrix(W1, W2)           # (W2, W1)
    Hp, Wp = H2 + 2, W2 + 2
    m = np.zeros((H1, W1, Hp, Wp), dtype=np.float32)
    m[:, :, 1:H2 + 1, 1:W2 + 1] = np.einsum('oh,pw->hwop', Ah, Aw)
    return m.reshape(H1 * W1, Hp * Wp)


# ----------------------------------------------------------------------------
# Pallas kernel
# ----------------------------------------------------------------------------
def _up_kernel(x1_ref, x2_ref, mt_ref, mask_ref,
               w1_ref, g1_ref, b1_ref,
               w2_ref, g2_ref, b2_ref,
               out_ref,
               xbuf_ref, p1_ref, hbuf_ref, p2_ref,
               *, N, H2, W2, C1, C2, Cmid, Cout):
    f32 = jnp.float32
    Cin = C1 + C2
    Wp = W2 + 2
    L = (H2 + 2) * Wp              # padded-flat spatial length per sample
    HALO = Wp + 1                  # halo so every 3x3 tap is a contiguous slice
    inv_npix = 1.0 / (N * H2 * W2)
    mask = mask_ref[...]           # (1, L): 1 on valid pixels, 0 on pad border

    # Zero only the halos (taps read into them on border rows); the image
    # region (incl. its zero border) is fully written below.
    xbuf_ref[:, :, 0:HALO] = jnp.zeros((N, Cin, HALO), f32)
    xbuf_ref[:, :, HALO + L:HALO + L + HALO] = jnp.zeros((N, Cin, HALO), f32)
    hbuf_ref[:, :, 0:HALO] = jnp.zeros((N, Cmid, HALO), f32)
    hbuf_ref[:, :, HALO + L:HALO + L + HALO] = jnp.zeros((N, Cmid, HALO), f32)

    # --- bilinear upsample + F.pad + conv zero-border: one MXU matmul --------
    # (x1 rows are (n, c) pairs; columns are the padded-flat spatial plane.)
    # Default MXU precision; pass precision=HIGHEST here for tighter f32 parity.
    up = jnp.dot(x1_ref[...], mt_ref[...], preferred_element_type=f32)  # (N*C1, L)

    # --- channel concat [x2, up] straight into the padded-flat conv input ----
    xbuf_ref[:, 0:C2, HALO:HALO + L] = x2_ref[...]
    for n in range(N):
        xbuf_ref[n, C2:Cin, HALO:HALO + L] = up[n * C1:(n + 1) * C1, :]

    def conv_bn_relu(src_ref, p_ref, w_ref, g_ref, b_ref, cin, cout):
        # im2col in padded-flat form: tap (dy,dx) = contiguous lane slice at
        # offset (dy-1)*Wp + (dx-1); one deep matmul per sample (K = 9*cin).
        ys = []
        for n in range(N):
            for k in range(9):
                dy, dx = k // 3, k % 3
                start = HALO + (dy - 1) * Wp + (dx - 1)
                p_ref[n, k * cin:(k + 1) * cin, :] = src_ref[n, :, start:start + L]
            ys.append(jnp.dot(w_ref[...], p_ref[n],
                              preferred_element_type=f32))          # (cout, L)
        # BatchNorm (training-mode batch stats) in a single pass over the
        # already-live conv output, masked to the N*H2*W2 valid pixels.
        s = sum(jnp.sum(y * mask, axis=1, keepdims=True) for y in ys)
        ss = sum(jnp.sum(y * y * mask, axis=1, keepdims=True) for y in ys)
        m = s * inv_npix
        v = ss * inv_npix - m * m
        scale = jax.lax.rsqrt(v + _EPS) * g_ref[...]                 # (cout, 1)
        shift = b_ref[...] - m * scale
        # Re-zero the pad border (mask) so the next conv sees correct zero pad.
        return [jnp.maximum(y * scale + shift, 0.0) * mask for y in ys]

    # --- conv1 -> BN -> ReLU ---------------------------------------------------
    h1 = conv_bn_relu(xbuf_ref, p1_ref, w1_ref, g1_ref, b1_ref, Cin, Cmid)
    for n in range(N):
        hbuf_ref[n, :, HALO:HALO + L] = h1[n]

    # --- conv2 -> BN -> ReLU ---------------------------------------------------
    h2 = conv_bn_relu(hbuf_ref, p2_ref, w2_ref, g2_ref, b2_ref, Cmid, Cout)
    for n in range(N):
        out_ref[n] = h2[n].astype(out_ref.dtype)                     # lane-dense store


def _full_vmem_spec(shape):
    nd = len(shape)
    return pl.BlockSpec(shape, lambda i, _nd=nd: (0,) * _nd)


# ----------------------------------------------------------------------------
# Wrapper: NCHW in / NCHW out (matches PyTorch).  No activation transposes.
# ----------------------------------------------------------------------------
def up_pallas(x1_nchw, x2_nchw, params):
    # cb1/cb2 (conv biases) are accepted for interface parity but not used:
    # a per-channel constant is exactly cancelled by the following BatchNorm.
    (w1, cb1, g1, b1, w2, cb2, g2, b2) = params
    del cb1, cb2
    N, C1, H1, W1 = x1_nchw.shape
    _, C2, H2, W2 = x2_nchw.shape
    Cin, Cmid, Cout = C1 + C2, w1.shape[-1], w2.shape[-1]
    Hp, Wp = H2 + 2, W2 + 2
    L = Hp * Wp
    HALO = Wp + 1
    LB = L + 2 * HALO

    # Upsample(+pad+border) interpolation matrix and valid-pixel mask (numpy).
    mt = jnp.asarray(build_up_matrix_padded_flat(H1, W1, H2, W2))   # (H1*W1, L)
    mask_np = np.zeros((Hp, Wp), np.float32)
    mask_np[1:H2 + 1, 1:W2 + 1] = 1.0
    mask = jnp.asarray(mask_np.reshape(1, L))

    # NCHW is already channel-major / spatial-last: only free reshapes + a tiny
    # 1-pixel pad of x2 (no NHWC transposes).
    x1f = x1_nchw.reshape(N * C1, H1 * W1)
    x2pf = jnp.pad(x2_nchw, ((0, 0), (0, 0), (1, 1), (1, 1))).reshape(N, C2, L)

    # Conv weights as (Cout, 9*Cin) matching the im2col row order (dy, dx, ci).
    w1m = jnp.transpose(w1.reshape(9 * Cin, Cmid))
    w2m = jnp.transpose(w2.reshape(9 * Cmid, Cout))
    g1c, b1c = g1.reshape(Cmid, 1), b1.reshape(Cmid, 1)
    g2c, b2c = g2.reshape(Cout, 1), b2.reshape(Cout, 1)

    kernel = functools.partial(_up_kernel, N=N, H2=H2, W2=W2,
                               C1=C1, C2=C2, Cmid=Cmid, Cout=Cout)
    inputs = (x1f, x2pf, mt, mask, w1m, g1c, b1c, w2m, g2c, b2c)

    out_pf = pl.pallas_call(
        kernel,
        out_shape=jax.ShapeDtypeStruct((N, Cout, L), jnp.float32),
        grid_spec=pltpu.PrefetchScalarGridSpec(
            num_scalar_prefetch=0,
            grid=(1,),
            in_specs=[_full_vmem_spec(x.shape) for x in inputs],
            out_specs=_full_vmem_spec((N, Cout, L)),
            scratch_shapes=[
                pltpu.VMEM((N, Cin, LB), jnp.float32),       # padded-flat concat input
                pltpu.VMEM((N, 9 * Cin, L), jnp.float32),    # im2col patch, conv1
                pltpu.VMEM((N, Cmid, LB), jnp.float32),      # padded-flat hidden
                pltpu.VMEM((N, 9 * Cmid, L), jnp.float32),   # im2col patch, conv2
            ],
        ),
        compiler_params=pltpu.CompilerParams(dimension_semantics=("arbitrary",)),
    )(*inputs)

    # Drop the conv zero-border columns (free-ish reshape + slice in XLA).
    return out_pf.reshape(N, Cout, Hp, Wp)[:, :, 1:H2 + 1, 1:W2 + 1]


# ----------------------------------------------------------------------------
# Pure-JAX reference (independent path; keeps the conv biases, so it also
# validates that BN cancels them).
# ----------------------------------------------------------------------------
def reference_up(x1_nchw, x2_nchw, params):
    (w1, cb1, g1, b1, w2, cb2, g2, b2) = params
    _, _, H1, W1 = x1_nchw.shape
    _, _, H2, W2 = x2_nchw.shape
    Ah = jnp.asarray(_axis_interp_matrix(H1, H2))
    Aw = jnp.asarray(_axis_interp_matrix(W1, W2))
    up = jnp.einsum('oh,pw,nchw->ncop', Ah, Aw, x1_nchw)
    x = jnp.concatenate([x2_nchw, up], axis=1)

    def conv_bn_relu(x, w_hwio, cb, g, b):
        y = jax.lax.conv_general_dilated(
            x, w_hwio, window_strides=(1, 1), padding=((1, 1), (1, 1)),
            dimension_numbers=('NCHW', 'HWIO', 'NCHW'))
        y = y + cb.reshape(1, -1, 1, 1)
        m = jnp.mean(y, axis=(0, 2, 3), keepdims=True)
        v = jnp.mean((y - m) ** 2, axis=(0, 2, 3), keepdims=True)
        y = (y - m) / jnp.sqrt(v + _EPS) * g.reshape(1, -1, 1, 1) + b.reshape(1, -1, 1, 1)
        return jnp.maximum(y, 0.0)

    h = conv_bn_relu(x, w1, cb1, g1, b1)
    return conv_bn_relu(h, w2, cb2, g2, b2)


# ----------------------------------------------------------------------------
if __name__ == "__main__":
    # Up(in_channels=8, out_channels=4): x1 and x2 each carry in_channels//2 = 4
    # channels (U-Net skip-connection shapes); x1 has half the spatial size.
    N = 2
    in_channels, out_channels = 8, 4
    C1 = C2 = in_channels // 2
    H1 = W1 = 8
    H2 = W2 = 16
    Cin, Cmid, Cout = in_channels, in_channels // 2, out_channels

    key = jax.random.PRNGKey(0)
    k = jax.random.split(key, 10)
    # Conv weights stored HWIO: w[dy, dx, ci, co] == torch_weight[co, ci, dy, dx].
    w1 = jax.random.normal(k[0], (3, 3, Cin, Cmid), jnp.float32) / np.sqrt(9 * Cin)
    cb1 = jax.random.normal(k[1], (Cmid,), jnp.float32) * 0.1
    g1 = 1.0 + 0.1 * jax.random.normal(k[6], (Cmid,), jnp.float32)
    b1 = 0.1 * jax.random.normal(k[7], (Cmid,), jnp.float32)
    w2 = jax.random.normal(k[2], (3, 3, Cmid, Cout), jnp.float32) / np.sqrt(9 * Cmid)
    cb2 = jax.random.normal(k[3], (Cout,), jnp.float32) * 0.1
    g2 = 1.0 + 0.1 * jax.random.normal(k[8], (Cout,), jnp.float32)
    b2 = 0.1 * jax.random.normal(k[9], (Cout,), jnp.float32)
    params = (w1, cb1, g1, b1, w2, cb2, g2, b2)

    x1 = jax.random.normal(k[4], (N, C1, H1, W1), jnp.float32)   # NCHW, like PyTorch
    x2 = jax.random.normal(k[5], (N, C2, H2, W2), jnp.float32)

    out = jax.block_until_ready(up_pallas(x1, x2, params))
    assert out.shape == (N, Cout, H2, W2), out.shape

    ref = reference_up(x1, x2, params)
    err = float(jnp.max(jnp.abs(out - ref)))
    assert err < 0.1, f"max abs err {err}"

    print("KERNEL_OK")
</pallas_src>

<mosaic_0001>
module attributes {stable_mosaic.version = 11 : i64} {
  func.func @_up_kernel(%arg0: i32, %arg1: memref<8x64xf32, #tpu.memory_space<vmem>>, %arg2: memref<2x4x324xf32, #tpu.memory_space<vmem>>, %arg3: memref<64x324xf32, #tpu.memory_space<vmem>>, %arg4: memref<1x324xf32, #tpu.memory_space<vmem>>, %arg5: memref<4x72xf32, #tpu.memory_space<vmem>>, %arg6: memref<4x1xf32, #tpu.memory_space<vmem>>, %arg7: memref<4x1xf32, #tpu.memory_space<vmem>>, %arg8: memref<4x36xf32, #tpu.memory_space<vmem>>, %arg9: memref<4x1xf32, #tpu.memory_space<vmem>>, %arg10: memref<4x1xf32, #tpu.memory_space<vmem>>, %arg11: memref<2x4x324xf32, #tpu.memory_space<vmem>>, %arg12: memref<2x8x362xf32, #tpu.memory_space<vmem>>, %arg13: memref<2x72x324xf32, #tpu.memory_space<vmem>>, %arg14: memref<2x4x362xf32, #tpu.memory_space<vmem>>, %arg15: memref<2x36x324xf32, #tpu.memory_space<vmem>>) attributes {dimension_semantics = [#tpu.dimension_semantics<arbitrary>], iteration_bounds = array<i64: 1>, scalar_prefetch = 0 : i64, scratch_operands = 4 : i64, tpu.core_type = #tpu.core_type<tc>, window_params = [{pipeline_mode = #tpu.pipeline_mode<synchronous>, transform_indices = @transform_0, window_bounds = array<i64: 8, 64>}, {pipeline_mode = #tpu.pipeline_mode<synchronous>, transform_indices = @transform_1, window_bounds = array<i64: 2, 4, 324>}, {pipeline_mode = #tpu.pipeline_mode<synchronous>, transform_indices = @transform_2, window_bounds = array<i64: 64, 324>}, {pipeline_mode = #tpu.pipeline_mode<synchronous>, transform_indices = @transform_3, window_bounds = array<i64: 1, 324>}, {pipeline_mode = #tpu.pipeline_mode<synchronous>, transform_indices = @transform_4, window_bounds = array<i64: 4, 72>}, {pipeline_mode = #tpu.pipeline_mode<synchronous>, transform_indices = @transform_5, window_bounds = array<i64: 4, 1>}, {pipeline_mode = #tpu.pipeline_mode<synchronous>, transform_indices = @transform_6, window_bounds = array<i64: 4, 1>}, {pipeline_mode = #tpu.pipeline_mode<synchronous>, transform_indices = @transform_7, window_bounds = array<i64: 4, 36>}, {pipeline_mode = #tpu.pipeline_mode<synchronous>, transform_indices = @transform_8, window_bounds = array<i64: 4, 1>}, {pipeline_mode = #tpu.pipeline_mode<synchronous>, transform_indices = @transform_9, window_bounds = array<i64: 4, 1>}, {pipeline_mode = #tpu.pipeline_mode<synchronous>, transform_indices = @transform_10, window_bounds = array<i64: 2, 4, 324>}]} {
    %c0 = arith.constant 0 : index
    %c0_0 = arith.constant 0 : index
    %0 = vector.load %arg4[%c0, %c0_0] : memref<1x324xf32, #tpu.memory_space<vmem>>, vector<1x324xf32>
    %cst = arith.constant 0.000000e+00 : f32
    %1 = vector.broadcast %cst : f32 to vector<2x8x19xf32>
    %c0_1 = arith.constant 0 : index
    %c0_2 = arith.constant 0 : index
    %c0_3 = arith.constant 0 : index
    %2 = vector.load %arg12[%c0_1, %c0_2, %c0_3] : memref<2x8x362xf32, #tpu.memory_space<vmem>>, vector<2x8x19xf32>
    tpu.vector_store %arg12[%c0_1, %c0_2, %c0_3], %1 {strides = array<i32>} : memref<2x8x362xf32, #tpu.memory_space<vmem>>, vector<2x8x19xf32>,
    %cst_4 = arith.constant 0.000000e+00 : f32
    %3 = vector.broadcast %cst_4 : f32 to vector<2x8x19xf32>
    %c0_5 = arith.constant 0 : index
    %c0_6 = arith.constant 0 : index
    %c343 = arith.constant 343 : index
    %4 = vector.load %arg12[%c0_5, %c0_6, %c343] : memref<2x8x362xf32, #tpu.memory_space<vmem>>, vector<2x8x19xf32>
    tpu.vector_store %arg12[%c0_5, %c0_6, %c343], %3 {strides = array<i32>} : memref<2x8x362xf32, #tpu.memory_space<vmem>>, vector<2x8x19xf32>,
    %cst_7 = arith.constant 0.000000e+00 : f32
    %5 = vector.broadcast %cst_7 : f32 to vector<2x4x19xf32>
    %c0_8 = arith.constant 0 : index
    %c0_9 = arith.constant 0 : index
    %c0_10 = arith.constant 0 : index
    %6 = vector.load %arg14[%c0_8, %c0_9, %c0_10] : memref<2x4x362xf32, #tpu.memory_space<vmem>>, vector<2x4x19xf32>
    tpu.vector_store %arg14[%c0_8, %c0_9, %c0_10], %5 {strides = array<i32>} : memref<2x4x362xf32, #tpu.memory_space<vmem>>, vector<2x4x19xf32>,
    %cst_11 = arith.constant 0.000000e+00 : f32
    %7 = vector.broadcast %cst_11 : f32 to vector<2x4x19xf32>
    %c0_12 = arith.constant 0 : index
    %c0_13 = arith.constant 0 : index
    %c343_14 = arith.constant 343 : index
    %8 = vector.load %arg14[%c0_12, %c0_13, %c343_14] : memref<2x4x362xf32, #tpu.memory_space<vmem>>, vector<2x4x19xf32>
    tpu.vector_store %arg14[%c0_12, %c0_13, %c343_14], %7 {strides = array<i32>} : memref<2x4x362xf32, #tpu.memory_space<vmem>>, vector<2x4x19xf32>,
    %c0_15 = arith.constant 0 : index
    %c0_16 = arith.constant 0 : index
    %9 = vector.load %arg1[%c0_15, %c0_16] : memref<8x64xf32, #tpu.memory_space<vmem>>, vector<8x64xf32>
    %c0_17 = arith.constant 0 : index
    %c0_18 = arith.constant 0 : index
    %10 = vector.load %arg3[%c0_17, %c0_18] : memref<64x324xf32, #tpu.memory_space<vmem>>, vector<64x324xf32>
    %cst_19 = arith.constant dense<0.000000e+00> : vector<8x324xf32>
    %11 = tpu.matmul %9, %10, %cst_19 {dimension_numbers = #tpu.dot_dimension_numbers<[1], [0], [0], [1], [0, 0, 1, 1], [], []>} : vector<8x64xf32>, vector<64x324xf32>, vector<8x324xf32> -> vector<8x324xf32>
    %c0_20 = arith.constant 0 : index
    %c0_21 = arith.constant 0 : index
    %c0_22 = arith.constant 0 : index
    %12 = vector.load %arg2[%c0_20, %c0_21, %c0_22] : memref<2x4x324xf32, #tpu.memory_space<vmem>>, vector<2x4x324xf32>
    %c0_23 = arith.constant 0 : index
    %c0_24 = arith.constant 0 : index
    %c19 = arith.constant 19 : index
    %13 = vector.load %arg12[%c0_23, %c0_24, %c19] : memref<2x8x362xf32, #tpu.memory_space<vmem>>, vector<2x4x324xf32>
    tpu.vector_store %arg12[%c0_23, %c0_24, %c19], %12 {strides = array<i32>} : memref<2x8x362xf32, #tpu.memory_space<vmem>>, vector<2x4x324xf32>,
    %14 = vector.extract_strided_slice %11 {offsets = [0, 0], sizes = [4, 324], strides = [1, 1]} : vector<8x324xf32> to vector<4x324xf32>
    %c0_25 = arith.constant 0 : index
    %c4 = arith.constant 4 : index
    %c19_26 = arith.constant 19 : index
    %15 = vector.load %arg12[%c0_25, %c4, %c19_26] : memref<2x8x362xf32, #tpu.memory_space<vmem>>, vector<1x4x324xf32>
    %16 = vector.shape_cast %15 : vector<1x4x324xf32> to vector<4x324xf32>
    %17 = vector.shape_cast %14 : vector<4x324xf32> to vector<1x4x324xf32>
    tpu.vector_store %arg12[%c0_25, %c4, %c19_26], %17 {strides = array<i32>} : memref<2x8x362xf32, #tpu.memory_space<vmem>>, vector<1x4x324xf32>,
    %18 = vector.extract_strided_slice %11 {offsets = [4, 0], sizes = [4, 324], strides = [1, 1]} : vector<8x324xf32> to vector<4x324xf32>
    %c1 = arith.constant 1 : index
    %c4_27 = arith.constant 4 : index
    %c19_28 = arith.constant 19 : index
    %19 = vector.load %arg12[%c1, %c4_27, %c19_28] : memref<2x8x362xf32, #tpu.memory_space<vmem>>, vector<1x4x324xf32>
    %20 = vector.shape_cast %19 : vector<1x4x324xf32> to vector<4x324xf32>
    %21 = vector.shape_cast %18 : vector<4x324xf32> to vector<1x4x324xf32>
    tpu.vector_store %arg12[%c1, %c4_27, %c19_28], %21 {strides = array<i32>} : memref<2x8x362xf32, #tpu.memory_space<vmem>>, vector<1x4x324xf32>,
    %c0_29 = arith.constant 0 : index
    %c0_30 = arith.constant 0 : index
    %c0_31 = arith.constant 0 : index
    %22 = vector.load %arg12[%c0_29, %c0_30, %c0_31] : memref<2x8x362xf32, #tpu.memory_space<vmem>>, vector<1x8x324xf32>
    %23 = vector.shape_cast %22 : vector<1x8x324xf32> to vector<8x324xf32>
    %c0_32 = arith.constant 0 : index
    %c0_33 = arith.constant 0 : index
    %c0_34 = arith.constant 0 : index
    %24 = vector.load %arg13[%c0_32, %c0_33, %c0_34] : memref<2x72x324xf32, #tpu.memory_space<vmem>>, vector<1x8x324xf32>
    %25 = vector.shape_cast %24 : vector<1x8x324xf32> to vector<8x324xf32>
    %26 = vector.shape_cast %23 : vector<8x324xf32> to vector<1x8x324xf32>
    tpu.vector_store %arg13[%c0_32, %c0_33, %c0_34], %26 {strides = array<i32>} : memref<2x72x324xf32, #tpu.memory_space<vmem>>, vector<1x8x324xf32>,
    %c0_35 = arith.constant 0 : index
    %c0_36 = arith.constant 0 : index
    %c1_37 = arith.constant 1 : index
    %27 = vector.load %arg12[%c0_35, %c0_36, %c1_37] : memref<2x8x362xf32, #tpu.memory_space<vmem>>, vector<1x8x324xf32>
    %28 = vector.shape_cast %27 : vector<1x8x324xf32> to vector<8x324xf32>
    %c0_38 = arith.constant 0 : index
    %c8 = arith.constant 8 : index
    %c0_39 = arith.constant 0 : index
    %29 = vector.load %arg13[%c0_38, %c8, %c0_39] : memref<2x72x324xf32, #tpu.memory_space<vmem>>, vector<1x8x324xf32>
    %30 = vector.shape_cast %29 : vector<1x8x324xf32> to vector<8x324xf32>
    %31 = vector.shape_cast %28 : vector<8x324xf32> to vector<1x8x324xf32>
    tpu.vector_store %arg13[%c0_38, %c8, %c0_39], %31 {strides = array<i32>} : memref<2x72x324xf32, #tpu.memory_space<vmem>>, vector<1x8x324xf32>,
    %c0_40 = arith.constant 0 : index
    %c0_41 = arith.constant 0 : index
    %c2 = arith.constant 2 : index
    %32 = vector.load %arg12[%c0_40, %c0_41, %c2] : memref<2x8x362xf32, #tpu.memory_space<vmem>>, vector<1x8x324xf32>
    %33 = vector.shape_cast %32 : vector<1x8x324xf32> to vector<8x324xf32>
    %c0_42 = arith.constant 0 : index
    %c16 = arith.constant 16 : index
    %c0_43 = arith.constant 0 : index
    %34 = vector.load %arg13[%c0_42, %c16, %c0_43] : memref<2x72x324xf32, #tpu.memory_space<vmem>>, vector<1x8x324xf32>
    %35 = vector.shape_cast %34 : vector<1x8x324xf32> to vector<8x324xf32>
    %36 = vector.shape_cast %33 : vector<8x324xf32> to vector<1x8x324xf32>
    tpu.vector_store %arg13[%c0_42, %c16, %c0_43], %36 {strides = array<i32>} : memref<2x72x324xf32, #tpu.memory_space<vmem>>, vector<1x8x324xf32>,
    %c0_44 = arith.constant 0 : index
    %c0_45 = arith.constant 0 : index
    %c18 = arith.constant 18 : index
    %37 = vector.load %arg12[%c0_44, %c0_45, %c18] : memref<2x8x362xf32, #tpu.memory_space<vmem>>, vector<1x8x324xf32>
    %38 = vector.shape_cast %37 : vector<1x8x324xf32> to vector<8x324xf32>
    %c0_46 = arith.constant 0 : index
    %c24 = arith.constant 24 : index
    %c0_47 = arith.constant 0 : index
    %39 = vector.load %arg13[%c0_46, %c24, %c0_47] : memref<2x72x324xf32, #tpu.memory_space<vmem>>, vector<1x8x324xf32>
    %40 = vector.shape_cast %39 : vector<1x8x324xf32> to vector<8x324xf32>
    %41 = vector.shape_cast %38 : vector<8x324xf32> to vector<1x8x324xf32>
    tpu.vector_store %arg13[%c0_46, %c24, %c0_47], %41 {strides = array<i32>} : memref<2x72x324xf32, #tpu.memory_space<vmem>>, vector<1x8x324xf32>,
    %c0_48 = arith.constant 0 : index
    %c0_49 = arith.constant 0 : index
    %c19_50 = arith.constant 19 : index
    %42 = vector.load %arg12[%c0_48, %c0_49, %c19_50] : memref<2x8x362xf32, #tpu.memory_space<vmem>>, vector<1x8x324xf32>
    %43 = vector.shape_cast %42 : vector<1x8x324xf32> to vector<8x324xf32>
    %c0_51 = arith.constant 0 : index
    %c32 = arith.constant 32 : index
    %c0_52 = arith.constant 0 : index
    %44 = vector.load %arg13[%c0_51, %c32, %c0_52] : memref<2x72x324xf32, #tpu.memory_space<vmem>>, vector<1x8x324xf32>
    %45 = vector.shape_cast %44 : vector<1x8x324xf32> to vector<8x324xf32>
    %46 = vector.shape_cast %43 : vector<8x324xf32> to vector<1x8x324xf32>
    tpu.vector_store %arg13[%c0_51, %c32, %c0_52], %46 {strides = array<i32>} : memref<2x72x324xf32, #tpu.memory_space<vmem>>, vector<1x8x324xf32>,
    %c0_53 = arith.constant 0 : index
    %c0_54 = arith.constant 0 : index
    %c20 = arith.constant 20 : index
    %47 = vector.load %arg12[%c0_53, %c0_54, %c20] : memref<2x8x362xf32, #tpu.memory_space<vmem>>, vector<1x8x324xf32>
    %48 = vector.shape_cast %47 : vector<1x8x324xf32> to vector<8x324xf32>
    %c0_55 = arith.constant 0 : index
    %c40 = arith.constant 40 : index
    %c0_56 = arith.constant 0 : index
    %49 = vector.load %arg13[%c0_55, %c40, %c0_56] : memref<2x72x324xf32, #tpu.memory_space<vmem>>, vector<1x8x324xf32>
    %50 = vector.shape_cast %49 : vector<1x8x324xf32> to vector<8x324xf32>
    %51 = vector.shape_cast %48 : vector<8x324xf32> to vector<1x8x324xf32>
    tpu.vector_store %arg13[%c0_55, %c40, %c0_56], %51 {strides = array<i32>} : memref<2x72x324xf32, #tpu.memory_space<vmem>>, vector<1x8x324xf32>,
    %c0_57 = arith.constant 0 : index
    %c0_58 = arith.constant 0 : index
    %c36 = arith.constant 36 : index
    %52 = vector.load %arg12[%c0_57, %c0_58, %c36] : memref<2x8x362xf32, #tpu.memory_space<vmem>>, vector<1x8x324xf32>
    %53 = vector.shape_cast %52 : vector<1x8x324xf32> to vector<8x324xf32>
    %c0_59 = arith.constant 0 : index
    %c48 = arith.constant 48 : index
    %c0_60 = arith.constant 0 : index
    %54 = vector.load %arg13[%c0_59, %c48, %c0_60] : memref<2x72x324xf32, #tpu.memory_space<vmem>>, vector<1x8x324xf32>
    %55 = vector.shape_cast %54 : vector<1x8x324xf32> to vector<8x324xf32>
    %56 = vector.shape_cast %53 : vector<8x324xf32> to vector<1x8x324xf32>
    tpu.vector_store %arg13[%c0_59, %c48, %c0_60], %56 {strides = array<i32>} : memref<2x72x324xf32, #tpu.memory_space<vmem>>, vector<1x8x324xf32>,
    %c0_61 = arith.constant 0 : index
    %c0_62 = arith.constant 0 : index
    %c37 = arith.constant 37 : index
    %57 = vector.load %arg12[%c0_61, %c0_62, %c37] : memref<2x8x362xf32, #tpu.memory_space<vmem>>, vector<1x8x324xf32>
    %58 = vector.shape_cast %57 : vector<1x8x324xf32> to vector<8x324xf32>
    %c0_63 = arith.constant 0 : index
    %c56 = arith.constant 56 : index
    %c0_64 = arith.constant 0 : index
    %59 = vector.load %arg13[%c0_63, %c56, %c0_64] : memref<2x72x324xf32, #tpu.memory_space<vmem>>, vector<1x8x324xf32>
    %60 = vector.shape_cast %59 : vector<1x8x324xf32> to vector<8x324xf32>
    %61 = vector.shape_cast %58 : vector<8x324xf32> to vector<1x8x324xf32>
    tpu.vector_store %arg13[%c0_63, %c56, %c0_64], %61 {strides = array<i32>} : memref<2x72x324xf32, #tpu.memory_space<vmem>>, vector<1x8x324xf32>,
    %c0_65 = arith.constant 0 : index
    %c0_66 = arith.constant 0 : index
    %c38 = arith.constant 38 : index
    %62 = vector.load %arg12[%c0_65, %c0_66, %c38] : memref<2x8x362xf32, #tpu.memory_space<vmem>>, vector<1x8x324xf32>
    %63 = vector.shape_cast %62 : vector<1x8x324xf32> to vector<8x324xf32>
    %c0_67 = arith.constant 0 : index
    %c64 = arith.constant 64 : index
    %c0_68 = arith.constant 0 : index
    %64 = vector.load %arg13[%c0_67, %c64, %c0_68] : memref<2x72x324xf32, #tpu.memory_space<vmem>>, vector<1x8x324xf32>
    %65 = vector.shape_cast %64 : vector<1x8x324xf32> to vector<8x324xf32>
    %66 = vector.shape_cast %63 : vector<8x324xf32> to vector<1x8x324xf32>
    tpu.vector_store %arg13[%c0_67, %c64, %c0_68], %66 {strides = array<i32>} : memref<2x72x324xf32, #tpu.memory_space<vmem>>, vector<1x8x324xf32>,
    %c0_69 = arith.constant 0 : index
    %c0_70 = arith.constant 0 : index
    %67 = vector.load %arg5[%c0_69, %c0_70] : memref<4x72xf32, #tpu.memory_space<vmem>>, vector<4x72xf32>
    %c0_71 = arith.constant 0 : index
    %c0_72 = arith.constant 0 : index
    %c0_73 = arith.constant 0 : index
    %68 = vector.load %arg13[%c0_71, %c0_72, %c0_73] : memref<2x72x324xf32, #tpu.memory_space<vmem>>, vector<1x72x324xf32>
    %69 = vector.shape_cast %68 : vector<1x72x324xf32> to vector<72x324xf32>
    %cst_74 = arith.constant dense<0.000000e+00> : vector<4x324xf32>
    %70 = tpu.matmul %67, %69, %cst_74 {dimension_numbers = #tpu.dot_dimension_numbers<[1], [0], [0], [1], [0, 0, 1, 1], [], []>} : vector<4x72xf32>, vector<72x324xf32>, vector<4x324xf32> -> vector<4x324xf32>
    %c1_75 = arith.constant 1 : index
    %c0_76 = arith.constant 0 : index
    %c0_77 = arith.constant 0 : index
    %71 = vector.load %arg12[%c1_75, %c0_76, %c0_77] : memref<2x8x362xf32, #tpu.memory_space<vmem>>, vector<1x8x324xf32>
    %72 = vector.shape_cast %71 : vector<1x8x324xf32> to vector<8x324xf32>
    %c1_78 = arith.constant 1 : index
    %c0_79 = arith.constant 0 : index
    %c0_80 = arith.constant 0 : index
    %73 = vector.load %arg13[%c1_78, %c0_79, %c0_80] : memref<2x72x324xf32, #tpu.memory_space<vmem>>, vector<1x8x324xf32>
    %74 = vector.shape_cast %73 : vector<1x8x324xf32> to vector<8x324xf32>
    %75 = vector.shape_cast %72 : vector<8x324xf32> to vector<1x8x324xf32>
    tpu.vector_store %arg13[%c1_78, %c0_79, %c0_80], %75 {strides = array<i32>} : memref<2x72x324xf32, #tpu.memory_space<vmem>>, vector<1x8x324xf32>,
    %c1_81 = arith.constant 1 : index
    %c0_82 = arith.constant 0 : index
    %c1_83 = arith.constant 1 : index
    %76 = vector.load %arg12[%c1_81, %c0_82, %c1_83] : memref<2x8x362xf32, #tpu.memory_space<vmem>>, vector<1x8x324xf32>
    %77 = vector.shape_cast %76 : vector<1x8x324xf32> to vector<8x324xf32>
    %c1_84 = arith.constant 1 : index
    %c8_85 = arith.constant 8 : index
    %c0_86 = arith.constant 0 : index
    %78 = vector.load %arg13[%c1_84, %c8_85, %c0_86] : memref<2x72x324xf32, #tpu.memory_space<vmem>>, vector<1x8x324xf32>
    %79 = vector.shape_cast %78 : vector<1x8x324xf32> to vector<8x324xf32>
    %80 = vector.shape_cast %77 : vector<8x324xf32> to vector<1x8x324xf32>
    tpu.vector_store %arg13[%c1_84, %c8_85, %c0_86], %80 {strides = array<i32>} : memref<2x72x324xf32, #tpu.memory_space<vmem>>, vector<1x8x324xf32>,
    %c1_87 = arith.constant 1 : index
    %c0_88 = arith.constant 0 : index
    %c2_89 = arith.constant 2 : index
    %81 = vector.load %arg12[%c1_87, %c0_88, %c2_89] : memref<2x8x362xf32, #tpu.memory_space<vmem>>, vector<1x8x324xf32>
    %82 = vector.shape_cast %81 : vector<1x8x324xf32> to vector<8x324xf32>
    %c1_90 = arith.constant 1 : index
    %c16_91 = arith.constant 16 : index
    %c0_92 = arith.constant 0 : index
    %83 = vector.load %arg13[%c1_90, %c16_91, %c0_92] : memref<2x72x324xf32, #tpu.memory_space<vmem>>, vector<1x8x324xf32>
    %84 = vector.shape_cast %83 : vector<1x8x324xf32> to vector<8x324xf32>
    %85 = vector.shape_cast %82 : vector<8x324xf32> to vector<1x8x324xf32>
    tpu.vector_store %arg13[%c1_90, %c16_91, %c0_92], %85 {strides = array<i32>} : memref<2x72x324xf32, #tpu.memory_space<vmem>>, vector<1x8x324xf32>,
    %c1_93 = arith.constant 1 : index
    %c0_94 = arith.constant 0 : index
    %c18_95 = arith.constant 18 : index
    %86 = vector.load %arg12[%c1_93, %c0_94, %c18_95] : memref<2x8x362xf32, #tpu.memory_space<vmem>>, vector<1x8x324xf32>
    %87 = vector.shape_cast %86 : vector<1x8x324xf32> to vector<8x324xf32>
    %c1_96 = arith.constant 1 : index
    %c24_97 = arith.constant 24 : index
    %c0_98 = arith.constant 0 : index
    %88 = vector.load %arg13[%c1_96, %c24_97, %c0_98] : memref<2x72x324xf32, #tpu.memory_space<vmem>>, vector<1x8x324xf32>
    %89 = vector.shape_cast %88 : vector<1x8x324xf32> to vector<8x324xf32>
    %90 = vector.shape_cast %87 : vector<8x324xf32> to vector<1x8x324xf32>
    tpu.vector_store %arg13[%c1_96, %c24_97, %c0_98], %90 {strides = array<i32>} : memref<2x72x324xf32, #tpu.memory_space<vmem>>, vector<1x8x324xf32>,
    %c1_99 = arith.constant 1 : index
    %c0_100 = arith.constant 0 : index
    %c19_101 = arith.constant 19 : index
    %91 = vector.load %arg12[%c1_99, %c0_100, %c19_101] : memref<2x8x362xf32, #tpu.memory_space<vmem>>, vector<1x8x324xf32>
    %92 = vector.shape_cast %91 : vector<1x8x324xf32> to vector<8x324xf32>
    %c1_102 = arith.constant 1 : index
    %c32_103 = arith.constant 32 : index
    %c0_104 = arith.constant 0 : index
    %93 = vector.load %arg13[%c1_102, %c32_103, %c0_104] : memref<2x72x324xf32, #tpu.memory_space<vmem>>, vector<1x8x324xf32>
    %94 = vector.shape_cast %93 : vector<1x8x324xf32> to vector<8x324xf32>
    %95 = vector.shape_cast %92 : vector<8x324xf32> to vector<1x8x324xf32>
    tpu.vector_store %arg13[%c1_102, %c32_103, %c0_104], %95 {strides = array<i32>} : memref<2x72x324xf32, #tpu.memory_space<vmem>>, vector<1x8x324xf32>,
    %c1_105 = arith.constant 1 : index
    %c0_106 = arith.constant 0 : index
    %c20_107 = arith.constant 20 : index
    %96 = vector.load %arg12[%c1_105, %c0_106, %c20_107] : memref<2x8x362xf32, #tpu.memory_space<vmem>>, vector<1x8x324xf32>
    %97 = vector.shape_cast %96 : vector<1x8x324xf32> to vector<8x324xf32>
    %c1_108 = arith.constant 1 : index
    %c40_109 = arith.constant 40 : index
    %c0_110 = arith.constant 0 : index
    %98 = vector.load %arg13[%c1_108, %c40_109, %c0_110] : memref<2x72x324xf32, #tpu.memory_space<vmem>>, vector<1x8x324xf32>
    %99 = vector.shape_cast %98 : vector<1x8x324xf32> to vector<8x324xf32>
    %100 = vector.shape_cast %97 : vector<8x324xf32> to vector<1x8x324xf32>
    tpu.vector_store %arg13[%c1_108, %c40_109, %c0_110], %100 {strides = array<i32>} : memref<2x72x324xf32, #tpu.memory_space<vmem>>, vector<1x8x324xf32>,
    %c1_111 = arith.constant 1 : index
    %c0_112 = arith.constant 0 : index
    %c36_113 = arith.constant 36 : index
    %101 = vector.load %arg12[%c1_111, %c0_112, %c36_113] : memref<2x8x362xf32, #tpu.memory_space<vmem>>, vector<1x8x324xf32>
    %102 = vector.shape_cast %101 : vector<1x8x324xf32> to vector<8x324xf32>
    %c1_114 = arith.constant 1 : index
    %c48_115 = arith.constant 48 : index
    %c0_116 = arith.constant 0 : index
    %103 = vector.load %arg13[%c1_114, %c48_115, %c0_116] : memref<2x72x324xf32, #tpu.memory_space<vmem>>, vector<1x8x324xf32>
    %104 = vector.shape_cast %103 : vector<1x8x324xf32> to vector<8x324xf32>
    %105 = vector.shape_cast %102 : vector<8x324xf32> to vector<1x8x324xf32>
    tpu.vector_store %arg13[%c1_114, %c48_115, %c0_116], %105 {strides = array<i32>} : memref<2x72x324xf32, #tpu.memory_space<vmem>>, vector<1x8x324xf32>,
    %c1_117 = arith.constant 1 : index
    %c0_118 = arith.constant 0 : index
    %c37_119 = arith.constant 37 : index
    %106 = vector.load %arg12[%c1_117, %c0_118, %c37_119] : memref<2x8x362xf32, #tpu.memory_space<vmem>>, vector<1x8x324xf32>
    %107 = vector.shape_cast %106 : vector<1x8x324xf32> to vector<8x324xf32>
    %c1_120 = arith.constant 1 : index
    %c56_121 = arith.constant 56 : index
    %c0_122 = arith.constant 0 : index
    %108 = vector.load %arg13[%c1_120, %c56_121, %c0_122] : memref<2x72x324xf32, #tpu.memory_space<vmem>>, vector<1x8x324xf32>
    %109 = vector.shape_cast %108 : vector<1x8x324xf32> to vector<8x324xf32>
    %110 = vector.shape_cast %107 : vector<8x324xf32> to vector<1x8x324xf32>
    tpu.vector_store %arg13[%c1_120, %c56_121, %c0_122], %110 {strides = array<i32>} : memref<2x72x324xf32, #tpu.memory_space<vmem>>, vector<1x8x324xf32>,
    %c1_123 = arith.constant 1 : index
    %c0_124 = arith.constant 0 : index
    %c38_125 = arith.constant 38 : index
    %111 = vector.load %arg12[%c1_123, %c0_124, %c38_125] : memref<2x8x362xf32, #tpu.memory_space<vmem>>, vector<1x8x324xf32>
    %112 = vector.shape_cast %111 : vector<1x8x324xf32> to vector<8x324xf32>
    %c1_126 = arith.constant 1 : index
    %c64_127 = arith.constant 64 : index
    %c0_128 = arith.constant 0 : index
    %113 = vector.load %arg13[%c1_126, %c64_127, %c0_128] : memref<2x72x324xf32, #tpu.memory_space<vmem>>, vector<1x8x324xf32>
    %114 = vector.shape_cast %113 : vector<1x8x324xf32> to vector<8x324xf32>
    %115 = vector.shape_cast %112 : vector<8x324xf32> to vector<1x8x324xf32>
    tpu.vector_store %arg13[%c1_126, %c64_127, %c0_128], %115 {strides = array<i32>} : memref<2x72x324xf32, #tpu.memory_space<vmem>>, vector<1x8x324xf32>,
    %c0_129 = arith.constant 0 : index
    %c0_130 = arith.constant 0 : index
    %116 = vector.load %arg5[%c0_129, %c0_130] : memref<4x72xf32, #tpu.memory_space<vmem>>, vector<4x72xf32>
    %c1_131 = arith.constant 1 : index
    %c0_132 = arith.constant 0 : index
    %c0_133 = arith.constant 0 : index
    %117 = vector.load %arg13[%c1_131, %c0_132, %c0_133] : memref<2x72x324xf32, #tpu.memory_space<vmem>>, vector<1x72x324xf32>
    %118 = vector.shape_cast %117 : vector<1x72x324xf32> to vector<72x324xf32>
    %cst_134 = arith.constant dense<0.000000e+00> : vector<4x324xf32>
    %119 = tpu.matmul %116, %118, %cst_134 {dimension_numbers = #tpu.dot_dimension_numbers<[1], [0], [0], [1], [0, 0, 1, 1], [], []>} : vector<4x72xf32>, vector<72x324xf32>, vector<4x324xf32> -> vector<4x324xf32>
    %120 = vector.broadcast %0 : vector<1x324xf32> to vector<4x324xf32>
    %121 = arith.mulf %70, %120 : vector<4x324xf32>
    %cst_135 = arith.constant dense<0.000000e+00> : vector<4xf32>
    %122 = vector.multi_reduction <add>, %121, %cst_135 [1] : vector<4x324xf32> to vector<4xf32>
    %123 = vector.shape_cast %122 : vector<4xf32> to vector<4x1xf32>
    %cst_136 = arith.constant 0.000000e+00 : f32
    %124 = vector.broadcast %cst_136 : f32 to vector<4x1xf32>
    %125 = arith.addf %124, %123 : vector<4x1xf32>
    %126 = vector.broadcast %0 : vector<1x324xf32> to vector<4x324xf32>
    %127 = arith.mulf %119, %126 : vector<4x324xf32>
    %cst_137 = arith.constant dense<0.000000e+00> : vector<4xf32>
    %128 = vector.multi_reduction <add>, %127, %cst_137 [1] : vector<4x324xf32> to vector<4xf32>
    %129 = vector.shape_cast %128 : vector<4xf32> to vector<4x1xf32>
    %130 = arith.addf %125, %129 : vector<4x1xf32>
    %131 = arith.mulf %70, %70 : vector<4x324xf32>
    %132 = vector.broadcast %0 : vector<1x324xf32> to vector<4x324xf32>
    %133 = arith.mulf %131, %132 : vector<4x324xf32>
    %cst_138 = arith.constant dense<0.000000e+00> : vector<4xf32>
    %134 = vector.multi_reduction <add>, %133, %cst_138 [1] : vector<4x324xf32> to vector<4xf32>
    %135 = vector.shape_cast %134 : vector<4xf32> to vector<4x1xf32>
    %cst_139 = arith.constant 0.000000e+00 : f32
    %136 = vector.broadcast %cst_139 : f32 to vector<4x1xf32>
    %137 = arith.addf %136, %135 : vector<4x1xf32>
    %138 = arith.mulf %119, %119 : vector<4x324xf32>
    %139 = vector.broadcast %0 : vector<1x324xf32> to vector<4x324xf32>
    %140 = arith.mulf %138, %139 : vector<4x324xf32>
    %cst_140 = arith.constant dense<0.000000e+00> : vector<4xf32>
    %141 = vector.multi_reduction <add>, %140, %cst_140 [1] : vector<4x324xf32> to vector<4xf32>
    %142 = vector.shape_cast %141 : vector<4xf32> to vector<4x1xf32>
    %143 = arith.addf %137, %142 : vector<4x1xf32>
    %cst_141 = arith.constant 0.001953125 : f32
    %144 = vector.broadcast %cst_141 : f32 to vector<4x1xf32>
    %145 = arith.mulf %130, %144 : vector<4x1xf32>
    %cst_142 = arith.constant 0.001953125 : f32
    %146 = vector.broadcast %cst_142 : f32 to vector<4x1xf32>
    %147 = arith.mulf %143, %146 : vector<4x1xf32>
    %148 = arith.mulf %145, %145 : vector<4x1xf32>
    %149 = arith.subf %147, %148 : vector<4x1xf32>
    %cst_143 = arith.constant 9.99999974E-6 : f32
    %150 = vector.broadcast %cst_143 : f32 to vector<4x1xf32>
    %151 = arith.addf %149, %150 : vector<4x1xf32>
    %152 = math.rsqrt %151 : vector<4x1xf32>
    %c0_144 = arith.constant 0 : index
    %c0_145 = arith.constant 0 : index
    %153 = vector.load %arg6[%c0_144, %c0_145] : memref<4x1xf32, #tpu.memory_space<vmem>>, vector<4x1xf32>
    %154 = arith.mulf %152, %153 : vector<4x1xf32>
    %c0_146 = arith.constant 0 : index
    %c0_147 = arith.constant 0 : index
    %155 = vector.load %arg7[%c0_146, %c0_147] : memref<4x1xf32, #tpu.memory_space<vmem>>, vector<4x1xf32>
    %156 = arith.mulf %145, %154 : vector<4x1xf32>
    %157 = arith.subf %155, %156 : vector<4x1xf32>
    %158 = vector.broadcast %154 : vector<4x1xf32> to vector<4x324xf32>
    %159 = arith.mulf %70, %158 : vector<4x324xf32>
    %160 = vector.broadcast %157 : vector<4x1xf32> to vector<4x324xf32>
    %161 = arith.addf %159, %160 : vector<4x324xf32>
    %cst_148 = arith.constant 0.000000e+00 : f32
    %162 = vector.broadcast %cst_148 : f32 to vector<4x324xf32>
    %163 = arith.maximumf %161, %162 : vector<4x324xf32>
    %164 = vector.broadcast %0 : vector<1x324xf32> to vector<4x324xf32>
    %165 = arith.mulf %163, %164 : vector<4x324xf32>
    %166 = vector.broadcast %154 : vector<4x1xf32> to vector<4x324xf32>
    %167 = arith.mulf %119, %166 : vector<4x324xf32>
    %168 = vector.broadcast %157 : vector<4x1xf32> to vector<4x324xf32>
    %169 = arith.addf %167, %168 : vector<4x324xf32>
    %cst_149 = arith.constant 0.000000e+00 : f32
    %170 = vector.broadcast %cst_149 : f32 to vector<4x324xf32>
    %171 = arith.maximumf %169, %170 : vector<4x324xf32>
    %172 = vector.broadcast %0 : vector<1x324xf32> to vector<4x324xf32>
    %173 = arith.mulf %171, %172 : vector<4x324xf32>
    %c0_150 = arith.constant 0 : index
    %c0_151 = arith.constant 0 : index
    %c19_152 = arith.constant 19 : index
    %174 = vector.load %arg14[%c0_150, %c0_151, %c19_152] : memref<2x4x362xf32, #tpu.memory_space<vmem>>, vector<1x4x324xf32>
    %175 = vector.shape_cast %174 : vector<1x4x324xf32> to vector<4x324xf32>
    %176 = vector.shape_cast %165 : vector<4x324xf32> to vector<1x4x324xf32>
    tpu.vector_store %arg14[%c0_150, %c0_151, %c19_152], %176 {strides = array<i32>} : memref<2x4x362xf32, #tpu.memory_space<vmem>>, vector<1x4x324xf32>,
    %c1_153 = arith.constant 1 : index
    %c0_154 = arith.constant 0 : index
    %c19_155 = arith.constant 19 : index
    %177 = vector.load %arg14[%c1_153, %c0_154, %c19_155] : memref<2x4x362xf32, #tpu.memory_space<vmem>>, vector<1x4x324xf32>
    %178 = vector.shape_cast %177 : vector<1x4x324xf32> to vector<4x324xf32>
    %179 = vector.shape_cast %173 : vector<4x324xf32> to vector<1x4x324xf32>
    tpu.vector_store %arg14[%c1_153, %c0_154, %c19_155], %179 {strides = array<i32>} : memref<2x4x362xf32, #tpu.memory_space<vmem>>, vector<1x4x324xf32>,
    %c0_156 = arith.constant 0 : index
    %c0_157 = arith.constant 0 : index
    %c0_158 = arith.constant 0 : index
    %180 = vector.load %arg14[%c0_156, %c0_157, %c0_158] : memref<2x4x362xf32, #tpu.memory_space<vmem>>, vector<1x4x324xf32>
    %181 = vector.shape_cast %180 : vector<1x4x324xf32> to vector<4x324xf32>
    %c0_159 = arith.constant 0 : index
    %c0_160 = arith.constant 0 : index
    %c0_161 = arith.constant 0 : index
    %182 = vector.load %arg15[%c0_159, %c0_160, %c0_161] : memref<2x36x324xf32, #tpu.memory_space<vmem>>, vector<1x4x324xf32>
    %183 = vector.shape_cast %182 : vector<1x4x324xf32> to vector<4x324xf32>
    %184 = vector.shape_cast %181 : vector<4x324xf32> to vector<1x4x324xf32>
    tpu.vector_store %arg15[%c0_159, %c0_160, %c0_161], %184 {strides = array<i32>} : memref<2x36x324xf32, #tpu.memory_space<vmem>>, vector<1x4x324xf32>,
    %c0_162 = arith.constant 0 : index
    %c0_163 = arith.constant 0 : index
    %c1_164 = arith.constant 1 : index
    %185 = vector.load %arg14[%c0_162, %c0_163, %c1_164] : memref<2x4x362xf32, #tpu.memory_space<vmem>>, vector<1x4x324xf32>
    %186 = vector.shape_cast %185 : vector<1x4x324xf32> to vector<4x324xf32>
    %c0_165 = arith.constant 0 : index
    %c4_166 = arith.constant 4 : index
    %c0_167 = arith.constant 0 : index
    %187 = vector.load %arg15[%c0_165, %c4_166, %c0_167] : memref<2x36x324xf32, #tpu.memory_space<vmem>>, vector<1x4x324xf32>
    %188 = vector.shape_cast %187 : vector<1x4x324xf32> to vector<4x324xf32>
    %189 = vector.shape_cast %186 : vector<4x324xf32> to vector<1x4x324xf32>
    tpu.vector_store %arg15[%c0_165, %c4_166, %c0_167], %189 {strides = array<i32>} : memref<2x36x324xf32, #tpu.memory_space<vmem>>, vector<1x4x324xf32>,
    %c0_168 = arith.constant 0 : index
    %c0_169 = arith.constant 0 : index
    %c2_170 = arith.constant 2 : index
    %190 = vector.load %arg14[%c0_168, %c0_169, %c2_170] : memref<2x4x362xf32, #tpu.memory_space<vmem>>, vector<1x4x324xf32>
    %191 = vector.shape_cast %190 : vector<1x4x324xf32> to vector<4x324xf32>
    %c0_171 = arith.constant 0 : index
    %c8_172 = arith.constant 8 : index
    %c0_173 = arith.constant 0 : index
    %192 = vector.load %arg15[%c0_171, %c8_172, %c0_173] : memref<2x36x324xf32, #tpu.memory_space<vmem>>, vector<1x4x324xf32>
    %193 = vector.shape_cast %192 : vector<1x4x324xf32> to vector<4x324xf32>
    %194 = vector.shape_cast %191 : vector<4x324xf32> to vector<1x4x324xf32>
    tpu.vector_store %arg15[%c0_171, %c8_172, %c0_173], %194 {strides = array<i32>} : memref<2x36x324xf32, #tpu.memory_space<vmem>>, vector<1x4x324xf32>,
    %c0_174 = arith.constant 0 : index
    %c0_175 = arith.constant 0 : index
    %c18_176 = arith.constant 18 : index
    %195 = vector.load %arg14[%c0_174, %c0_175, %c18_176] : memref<2x4x362xf32, #tpu.memory_space<vmem>>, vector<1x4x324xf32>
    %196 = vector.shape_cast %195 : vector<1x4x324xf32> to vector<4x324xf32>
    %c0_177 = arith.constant 0 : index
    %c12 = arith.constant 12 : index
    %c0_178 = arith.constant 0 : index
    %197 = vector.load %arg15[%c0_177, %c12, %c0_178] : memref<2x36x324xf32, #tpu.memory_space<vmem>>, vector<1x4x324xf32>
    %198 = vector.shape_cast %197 : vector<1x4x324xf32> to vector<4x324xf32>
    %199 = vector.shape_cast %196 : vector<4x324xf32> to vector<1x4x324xf32>
    tpu.vector_store %arg15[%c0_177, %c12, %c0_178], %199 {strides = array<i32>} : memref<2x36x324xf32, #tpu.memory_space<vmem>>, vector<1x4x324xf32>,
    %c0_179 = arith.constant 0 : index
    %c0_180 = arith.constant 0 : index
    %c19_181 = arith.constant 19 : index
    %200 = vector.load %arg14[%c0_179, %c0_180, %c19_181] : memref<2x4x362xf32, #tpu.memory_space<vmem>>, vector<1x4x324xf32>
    %201 = vector.shape_cast %200 : vector<1x4x324xf32> to vector<4x324xf32>
    %c0_182 = arith.constant 0 : index
    %c16_183 = arith.constant 16 : index
    %c0_184 = arith.constant 0 : index
    %202 = vector.load %arg15[%c0_182, %c16_183, %c0_184] : memref<2x36x324xf32, #tpu.memory_space<vmem>>, vector<1x4x324xf32>
    %203 = vector.shape_cast %202 : vector<1x4x324xf32> to vector<4x324xf32>
    %204 = vector.shape_cast %201 : vector<4x324xf32> to vector<1x4x324xf32>
    tpu.vector_store %arg15[%c0_182, %c16_183, %c0_184], %204 {strides = array<i32>} : memref<2x36x324xf32, #tpu.memory_space<vmem>>, vector<1x4x324xf32>,
    %c0_185 = arith.constant 0 : index
    %c0_186 = arith.constant 0 : index
    %c20_187 = arith.constant 20 : index
    %205 = vector.load %arg14[%c0_185, %c0_186, %c20_187] : memref<2x4x362xf32, #tpu.memory_space<vmem>>, vector<1x4x324xf32>
    %206 = vector.shape_cast %205 : vector<1x4x324xf32> to vector<4x324xf32>
    %c0_188 = arith.constant 0 : index
    %c20_189 = arith.constant 20 : index
    %c0_190 = arith.constant 0 : index
    %207 = vector.load %arg15[%c0_188, %c20_189, %c0_190] : memref<2x36x324xf32, #tpu.memory_space<vmem>>, vector<1x4x324xf32>
    %208 = vector.shape_cast %207 : vector<1x4x324xf32> to vector<4x324xf32>
    %209 = vector.shape_cast %206 : vector<4x324xf32> to vector<1x4x324xf32>
    tpu.vector_store %arg15[%c0_188, %c20_189, %c0_190], %209 {strides = array<i32>} : memref<2x36x324xf32, #tpu.memory_space<vmem>>, vector<1x4x324xf32>,
    %c0_191 = arith.constant 0 : index
    %c0_192 = arith.constant 0 : index
    %c36_193 = arith.constant 36 : index
    %210 = vector.load %arg14[%c0_191, %c0_192, %c36_193] : memref<2x4x362xf32, #tpu.memory_space<vmem>>, vector<1x4x324xf32>
    %211 = vector.shape_cast %210 : vector<1x4x324xf32> to vector<4x324xf32>
    %c0_194 = arith.constant 0 : index
    %c24_195 = arith.constant 24 : index
    %c0_196 = arith.constant 0 : index
    %212 = vector.load %arg15[%c0_194, %c24_195, %c0_196] : memref<2x36x324xf32, #tpu.memory_space<vmem>>, vector<1x4x324xf32>
    %213 = vector.shape_cast %212 : vector<1x4x324xf32> to vector<4x324xf32>
    %214 = vector.shape_cast %211 : vector<4x324xf32> to vector<1x4x324xf32>
    tpu.vector_store %arg15[%c0_194, %c24_195, %c0_196], %214 {strides = array<i32>} : memref<2x36x324xf32, #tpu.memory_space<vmem>>, vector<1x4x324xf32>,
    %c0_197 = arith.constant 0 : index
    %c0_198 = arith.constant 0 : index
    %c37_199 = arith.constant 37 : index
    %215 = vector.load %arg14[%c0_197, %c0_198, %c37_199] : memref<2x4x362xf32, #tpu.memory_space<vmem>>, vector<1x4x324xf32>
    %216 = vector.shape_cast %215 : vector<1x4x324xf32> to vector<4x324xf32>
    %c0_200 = arith.constant 0 : index
    %c28 = arith.constant 28 : index
    %c0_201 = arith.constant 0 : index
    %217 = vector.load %arg15[%c0_200, %c28, %c0_201] : memref<2x36x324xf32, #tpu.memory_space<vmem>>, vector<1x4x324xf32>
    %218 = vector.shape_cast %217 : vector<1x4x324xf32> to vector<4x324xf32>
    %219 = vector.shape_cast %216 : vector<4x324xf32> to vector<1x4x324xf32>
    tpu.vector_store %arg15[%c0_200, %c28, %c0_201], %219 {strides = array<i32>} : memref<2x36x324xf32, #tpu.memory_space<vmem>>, vector<1x4x324xf32>,
    %c0_202 = arith.constant 0 : index
    %c0_203 = arith.constant 0 : index
    %c38_204 = arith.constant 38 : index
    %220 = vector.load %arg14[%c0_202, %c0_203, %c38_204] : memref<2x4x362xf32, #tpu.memory_space<vmem>>, vector<1x4x324xf32>
    %221 = vector.shape_cast %220 : vector<1x4x324xf32> to vector<4x324xf32>
    %c0_205 = arith.constant 0 : index
    %c32_206 = arith.constant 32 : index
    %c0_207 = arith.constant 0 : index
    %222 = vector.load %arg15[%c0_205, %c32_206, %c0_207] : memref<2x36x324xf32, #tpu.memory_space<vmem>>, vector<1x4x324xf32>
    %223 = vector.shape_cast %222 : vector<1x4x324xf32> to vector<4x324xf32>
    %224 = vector.shape_cast %221 : vector<4x324xf32> to vector<1x4x324xf32>
    tpu.vector_store %arg15[%c0_205, %c32_206, %c0_207], %224 {strides = array<i32>} : memref<2x36x324xf32, #tpu.memory_space<vmem>>, vector<1x4x324xf32>,
    %c0_208 = arith.constant 0 : index
    %c0_209 = arith.constant 0 : index
    %225 = vector.load %arg8[%c0_208, %c0_209] : memref<4x36xf32, #tpu.memory_space<vmem>>, vector<4x36xf32>
    %c0_210 = arith.constant 0 : index
    %c0_211 = arith.constant 0 : index
    %c0_212 = arith.constant 0 : index
    %226 = vector.load %arg15[%c0_210, %c0_211, %c0_212] : memref<2x36x324xf32, #tpu.memory_space<vmem>>, vector<1x36x324xf32>
    %227 = vector.shape_cast %226 : vector<1x36x324xf32> to vector<36x324xf32>
    %cst_213 = arith.constant dense<0.000000e+00> : vector<4x324xf32>
    %228 = tpu.matmul %225, %227, %cst_213 {dimension_numbers = #tpu.dot_dimension_numbers<[1], [0], [0], [1], [0, 0, 1, 1], [], []>} : vector<4x36xf32>, vector<36x324xf32>, vector<4x324xf32> -> vector<4x324xf32>
    %c1_214 = arith.constant 1 : index
    %c0_215 = arith.constant 0 : index
    %c0_216 = arith.constant 0 : index
    %229 = vector.load %arg14[%c1_214, %c0_215, %c0_216] : memref<2x4x362xf32, #tpu.memory_space<vmem>>, vector<1x4x324xf32>
    %230 = vector.shape_cast %229 : vector<1x4x324xf32> to vector<4x324xf32>
    %c1_217 = arith.constant 1 : index
    %c0_218 = arith.constant 0 : index
    %c0_219 = arith.constant 0 : index
    %231 = vector.load %arg15[%c1_217, %c0_218, %c0_219] : memref<2x36x324xf32, #tpu.memory_space<vmem>>, vector<1x4x324xf32>
    %232 = vector.shape_cast %231 : vector<1x4x324xf32> to vector<4x324xf32>
    %233 = vector.shape_cast %230 : vector<4x324xf32> to vector<1x4x324xf32>
    tpu.vector_store %arg15[%c1_217, %c0_218, %c0_219], %233 {strides = array<i32>} : memref<2x36x324xf32, #tpu.memory_space<vmem>>, vector<1x4x324xf32>,
    %c1_220 = arith.constant 1 : index
    %c0_221 = arith.constant 0 : index
    %c1_222 = arith.constant 1 : index
    %234 = vector.load %arg14[%c1_220, %c0_221, %c1_222] : memref<2x4x362xf32, #tpu.memory_space<vmem>>, vector<1x4x324xf32>
    %235 = vector.shape_cast %234 : vector<1x4x324xf32> to vector<4x324xf32>
    %c1_223 = arith.constant 1 : index
    %c4_224 = arith.constant 4 : index
    %c0_225 = arith.constant 0 : index
    %236 = vector.load %arg15[%c1_223, %c4_224, %c0_225] : memref<2x36x324xf32, #tpu.memory_space<vmem>>, vector<1x4x324xf32>
    %237 = vector.shape_cast %236 : vector<1x4x324xf32> to vector<4x324xf32>
    %238 = vector.shape_cast %235 : vector<4x324xf32> to vector<1x4x324xf32>
    tpu.vector_store %arg15[%c1_223, %c4_224, %c0_225], %238 {strides = array<i32>} : memref<2x36x324xf32, #tpu.memory_space<vmem>>, vector<1x4x324xf32>,
    %c1_226 = arith.constant 1 : index
    %c0_227 = arith.constant 0 : index
    %c2_228 = arith.constant 2 : index
    %239 = vector.load %arg14[%c1_226, %c0_227, %c2_228] : memref<2x4x362xf32, #tpu.memory_space<vmem>>, vector<1x4x324xf32>
    %240 = vector.shape_cast %239 : vector<1x4x324xf32> to vector<4x324xf32>
    %c1_229 = arith.constant 1 : index
    %c8_230 = arith.constant 8 : index
    %c0_231 = arith.constant 0 : index
    %241 = vector.load %arg15[%c1_229, %c8_230, %c0_231] : memref<2x36x324xf32, #tpu.memory_space<vmem>>, vector<1x4x324xf32>
    %242 = vector.shape_cast %241 : vector<1x4x324xf32> to vector<4x324xf32>
    %243 = vector.shape_cast %240 : vector<4x324xf32> to vector<1x4x324xf32>
    tpu.vector_store %arg15[%c1_229, %c8_230, %c0_231], %243 {strides = array<i32>} : memref<2x36x324xf32, #tpu.memory_space<vmem>>, vector<1x4x324xf32>,
    %c1_232 = arith.constant 1 : index
    %c0_233 = arith.constant 0 : index
    %c18_234 = arith.constant 18 : index
    %244 = vector.load %arg14[%c1_232, %c0_233, %c18_234] : memref<2x4x362xf32, #tpu.memory_space<vmem>>, vector<1x4x324xf32>
    %245 = vector.shape_cast %244 : vector<1x4x324xf32> to vector<4x324xf32>
    %c1_235 = arith.constant 1 : index
    %c12_236 = arith.constant 12 : index
    %c0_237 = arith.constant 0 : index
    %246 = vector.load %arg15[%c1_235, %c12_236, %c0_237] : memref<2x36x324xf32, #tpu.memory_space<vmem>>, vector<1x4x324xf32>
    %247 = vector.shape_cast %246 : vector<1x4x324xf32> to vector<4x324xf32>
    %248 = vector.shape_cast %245 : vector<4x324xf32> to vector<1x4x324xf32>
    tpu.vector_store %arg15[%c1_235, %c12_236, %c0_237], %248 {strides = array<i32>} : memref<2x36x324xf32, #tpu.memory_space<vmem>>, vector<1x4x324xf32>,
    %c1_238 = arith.constant 1 : index
    %c0_239 = arith.constant 0 : index
    %c19_240 = arith.constant 19 : index
    %249 = vector.load %arg14[%c1_238, %c0_239, %c19_240] : memref<2x4x362xf32, #tpu.memory_space<vmem>>, vector<1x4x324xf32>
    %250 = vector.shape_cast %249 : vector<1x4x324xf32> to vector<4x324xf32>
    %c1_241 = arith.constant 1 : index
    %c16_242 = arith.constant 16 : index
    %c0_243 = arith.constant 0 : index
    %251 = vector.load %arg15[%c1_241, %c16_242, %c0_243] : memref<2x36x324xf32, #tpu.memory_space<vmem>>, vector<1x4x324xf32>
    %252 = vector.shape_cast %251 : vector<1x4x324xf32> to vector<4x324xf32>
    %253 = vector.shape_cast %250 : vector<4x324xf32> to vector<1x4x324xf32>
    tpu.vector_store %arg15[%c1_241, %c16_242, %c0_243], %253 {strides = array<i32>} : memref<2x36x324xf32, #tpu.memory_space<vmem>>, vector<1x4x324xf32>,
    %c1_244 = arith.constant 1 : index
    %c0_245 = arith.constant 0 : index
    %c20_246 = arith.constant 20 : index
    %254 = vector.load %arg14[%c1_244, %c0_245, %c20_246] : memref<2x4x362xf32, #tpu.memory_space<vmem>>, vector<1x4x324xf32>
    %255 = vector.shape_cast %254 : vector<1x4x324xf32> to vector<4x324xf32>
    %c1_247 = arith.constant 1 : index
    %c20_248 = arith.constant 20 : index
    %c0_249 = arith.constant 0 : index
    %256 = vector.load %arg15[%c1_247, %c20_248, %c0_249] : memref<2x36x324xf32, #tpu.memory_space<vmem>>, vector<1x4x324xf32>
    %257 = vector.shape_cast %256 : vector<1x4x324xf32> to vector<4x324xf32>
    %258 = vector.shape_cast %255 : vector<4x324xf32> to vector<1x4x324xf32>
    tpu.vector_store %arg15[%c1_247, %c20_248, %c0_249], %258 {strides = array<i32>} : memref<2x36x324xf32, #tpu.memory_space<vmem>>, vector<1x4x324xf32>,
    %c1_250 = arith.constant 1 : index
    %c0_251 = arith.constant 0 : index
    %c36_252 = arith.constant 36 : index
    %259 = vector.load %arg14[%c1_250, %c0_251, %c36_252] : memref<2x4x362xf32, #tpu.memory_space<vmem>>, vector<1x4x324xf32>
    %260 = vector.shape_cast %259 : vector<1x4x324xf32> to vector<4x324xf32>
    %c1_253 = arith.constant 1 : index
    %c24_254 = arith.constant 24 : index
    %c0_255 = arith.constant 0 : index
    %261 = vector.load %arg15[%c1_253, %c24_254, %c0_255] : memref<2x36x324xf32, #tpu.memory_space<vmem>>, vector<1x4x324xf32>
    %262 = vector.shape_cast %261 : vector<1x4x324xf32> to vector<4x324xf32>
    %263 = vector.shape_cast %260 : vector<4x324xf32> to vector<1x4x324xf32>
    tpu.vector_store %arg15[%c1_253, %c24_254, %c0_255], %263 {strides = array<i32>} : memref<2x36x324xf32, #tpu.memory_space<vmem>>, vector<1x4x324xf32>,
    %c1_256 = arith.constant 1 : index
    %c0_257 = arith.constant 0 : index
    %c37_258 = arith.constant 37 : index
    %264 = vector.load %arg14[%c1_256, %c0_257, %c37_258] : memref<2x4x362xf32, #tpu.memory_space<vmem>>, vector<1x4x324xf32>
    %265 = vector.shape_cast %264 : vector<1x4x324xf32> to vector<4x324xf32>
    %c1_259 = arith.constant 1 : index
    %c28_260 = arith.constant 28 : index
    %c0_261 = arith.constant 0 : index
    %266 = vector.load %arg15[%c1_259, %c28_260, %c0_261] : memref<2x36x324xf32, #tpu.memory_space<vmem>>, vector<1x4x324xf32>
    %267 = vector.shape_cast %266 : vector<1x4x324xf32> to vector<4x324xf32>
    %268 = vector.shape_cast %265 : vector<4x324xf32> to vector<1x4x324xf32>
    tpu.vector_store %arg15[%c1_259, %c28_260, %c0_261], %268 {strides = array<i32>} : memref<2x36x324xf32, #tpu.memory_space<vmem>>, vector<1x4x324xf32>,
    %c1_262 = arith.constant 1 : index
    %c0_263 = arith.constant 0 : index
    %c38_264 = arith.constant 38 : index
    %269 = vector.load %arg14[%c1_262, %c0_263, %c38_264] : memref<2x4x362xf32, #tpu.memory_space<vmem>>, vector<1x4x324xf32>
    %270 = vector.shape_cast %269 : vector<1x4x324xf32> to vector<4x324xf32>
    %c1_265 = arith.constant 1 : index
    %c32_266 = arith.constant 32 : index
    %c0_267 = arith.constant 0 : index
    %271 = vector.load %arg15[%c1_265, %c32_266, %c0_267] : memref<2x36x324xf32, #tpu.memory_space<vmem>>, vector<1x4x324xf32>
    %272 = vector.shape_cast %271 : vector<1x4x324xf32> to vector<4x324xf32>
    %273 = vector.shape_cast %270 : vector<4x324xf32> to vector<1x4x324xf32>
    tpu.vector_store %arg15[%c1_265, %c32_266, %c0_267], %273 {strides = array<i32>} : memref<2x36x324xf32, #tpu.memory_space<vmem>>, vector<1x4x324xf32>,
    %c0_268 = arith.constant 0 : index
    %c0_269 = arith.constant 0 : index
    %274 = vector.load %arg8[%c0_268, %c0_269] : memref<4x36xf32, #tpu.memory_space<vmem>>, vector<4x36xf32>
    %c1_270 = arith.constant 1 : index
    %c0_271 = arith.constant 0 : index
    %c0_272 = arith.constant 0 : index
    %275 = vector.load %arg15[%c1_270, %c0_271, %c0_272] : memref<2x36x324xf32, #tpu.memory_space<vmem>>, vector<1x36x324xf32>
    %276 = vector.shape_cast %275 : vector<1x36x324xf32> to vector<36x324xf32>
    %cst_273 = arith.constant dense<0.000000e+00> : vector<4x324xf32>
    %277 = tpu.matmul %274, %276, %cst_273 {dimension_numbers = #tpu.dot_dimension_numbers<[1], [0], [0], [1], [0, 0, 1, 1], [], []>} : vector<4x36xf32>, vector<36x324xf32>, vector<4x324xf32> -> vector<4x324xf32>
    %278 = vector.broadcast %0 : vector<1x324xf32> to vector<4x324xf32>
    %279 = arith.mulf %228, %278 : vector<4x324xf32>
    %cst_274 = arith.constant dense<0.000000e+00> : vector<4xf32>
    %280 = vector.multi_reduction <add>, %279, %cst_274 [1] : vector<4x324xf32> to vector<4xf32>
    %281 = vector.shape_cast %280 : vector<4xf32> to vector<4x1xf32>
    %cst_275 = arith.constant 0.000000e+00 : f32
    %282 = vector.broadcast %cst_275 : f32 to vector<4x1xf32>
    %283 = arith.addf %282, %281 : vector<4x1xf32>
    %284 = vector.broadcast %0 : vector<1x324xf32> to vector<4x324xf32>
    %285 = arith.mulf %277, %284 : vector<4x324xf32>
    %cst_276 = arith.constant dense<0.000000e+00> : vector<4xf32>
    %286 = vector.multi_reduction <add>, %285, %cst_276 [1] : vector<4x324xf32> to vector<4xf32>
    %287 = vector.shape_cast %286 : vector<4xf32> to vector<4x1xf32>
    %288 = arith.addf %283, %287 : vector<4x1xf32>
    %289 = arith.mulf %228, %228 : vector<4x324xf32>
    %290 = vector.broadcast %0 : vector<1x324xf32> to vector<4x324xf32>
    %291 = arith.mulf %289, %290 : vector<4x324xf32>
    %cst_277 = arith.constant dense<0.000000e+00> : vector<4xf32>
    %292 = vector.multi_reduction <add>, %291, %cst_277 [1] : vector<4x324xf32> to vector<4xf32>
    %293 = vector.shape_cast %292 : vector<4xf32> to vector<4x1xf32>
    %cst_278 = arith.constant 0.000000e+00 : f32
    %294 = vector.broadcast %cst_278 : f32 to vector<4x1xf32>
    %295 = arith.addf %294, %293 : vector<4x1xf32>
    %296 = arith.mulf %277, %277 : vector<4x324xf32>
    %297 = vector.broadcast %0 : vector<1x324xf32> to vector<4x324xf32>
    %298 = arith.mulf %296, %297 : vector<4x324xf32>
    %cst_279 = arith.constant dense<0.000000e+00> : vector<4xf32>
    %299 = vector.multi_reduction <add>, %298, %cst_279 [1] : vector<4x324xf32> to vector<4xf32>
    %300 = vector.shape_cast %299 : vector<4xf32> to vector<4x1xf32>
    %301 = arith.addf %295, %300 : vector<4x1xf32>
    %cst_280 = arith.constant 0.001953125 : f32
    %302 = vector.broadcast %cst_280 : f32 to vector<4x1xf32>
    %303 = arith.mulf %288, %302 : vector<4x1xf32>
    %cst_281 = arith.constant 0.001953125 : f32
    %304 = vector.broadcast %cst_281 : f32 to vector<4x1xf32>
    %305 = arith.mulf %301, %304 : vector<4x1xf32>
    %306 = arith.mulf %303, %303 : vector<4x1xf32>
    %307 = arith.subf %305, %306 : vector<4x1xf32>
    %cst_282 = arith.constant 9.99999974E-6 : f32
    %308 = vector.broadcast %cst_282 : f32 to vector<4x1xf32>
    %309 = arith.addf %307, %308 : vector<4x1xf32>
    %310 = math.rsqrt %309 : vector<4x1xf32>
    %c0_283 = arith.constant 0 : index
    %c0_284 = arith.constant 0 : index
    %311 = vector.load %arg9[%c0_283, %c0_284] : memref<4x1xf32, #tpu.memory_space<vmem>>, vector<4x1xf32>
    %312 = arith.mulf %310, %311 : vector<4x1xf32>
    %c0_285 = arith.constant 0 : index
    %c0_286 = arith.constant 0 : index
    %313 = vector.load %arg10[%c0_285, %c0_286] : memref<4x1xf32, #tpu.memory_space<vmem>>, vector<4x1xf32>
    %314 = arith.mulf %303, %312 : vector<4x1xf32>
    %315 = arith.subf %313, %314 : vector<4x1xf32>
    %316 = vector.broadcast %312 : vector<4x1xf32> to vector<4x324xf32>
    %317 = arith.mulf %228, %316 : vector<4x324xf32>
    %318 = vector.broadcast %315 : vector<4x1xf32> to vector<4x324xf32>
    %319 = arith.addf %317, %318 : vector<4x324xf32>
    %cst_287 = arith.constant 0.000000e+00 : f32
    %320 = vector.broadcast %cst_287 : f32 to vector<4x324xf32>
    %321 = arith.maximumf %319, %320 : vector<4x324xf32>
    %322 = vector.broadcast %0 : vector<1x324xf32> to vector<4x324xf32>
    %323 = arith.mulf %321, %322 : vector<4x324xf32>
    %324 = vector.broadcast %312 : vector<4x1xf32> to vector<4x324xf32>
    %325 = arith.mulf %277, %324 : vector<4x324xf32>
    %326 = vector.broadcast %315 : vector<4x1xf32> to vector<4x324xf32>
    %327 = arith.addf %325, %326 : vector<4x324xf32>
    %cst_288 = arith.constant 0.000000e+00 : f32
    %328 = vector.broadcast %cst_288 : f32 to vector<4x324xf32>
    %329 = arith.maximumf %327, %328 : vector<4x324xf32>
    %330 = vector.broadcast %0 : vector<1x324xf32> to vector<4x324xf32>
    %331 = arith.mulf %329, %330 : vector<4x324xf32>
    %c0_289 = arith.constant 0 : index
    %c0_290 = arith.constant 0 : index
    %c0_291 = arith.constant 0 : index
    %332 = vector.load %arg11[%c0_289, %c0_290, %c0_291] : memref<2x4x324xf32, #tpu.memory_space<vmem>>, vector<1x4x324xf32>
    %333 = vector.shape_cast %332 : vector<1x4x324xf32> to vector<4x324xf32>
    %334 = vector.shape_cast %323 : vector<4x324xf32> to vector<1x4x324xf32>
    tpu.vector_store %arg11[%c0_289, %c0_290, %c0_291], %334 {strides = array<i32>} : memref<2x4x324xf32, #tpu.memory_space<vmem>>, vector<1x4x324xf32>,
    %c1_292 = arith.constant 1 : index
    %c0_293 = arith.constant 0 : index
    %c0_294 = arith.constant 0 : index
    %335 = vector.load %arg11[%c1_292, %c0_293, %c0_294] : memref<2x4x324xf32, #tpu.memory_space<vmem>>, vector<1x4x324xf32>
    %336 = vector.shape_cast %335 : vector<1x4x324xf32> to vector<4x324xf32>
    %337 = vector.shape_cast %331 : vector<4x324xf32> to vector<1x4x324xf32>
    tpu.vector_store %arg11[%c1_292, %c0_293, %c0_294], %337 {strides = array<i32>} : memref<2x4x324xf32, #tpu.memory_space<vmem>>, vector<1x4x324xf32>,
    return
  }
  func.func @transform_0(%arg0: i32) -> (i32, i32) {
    %c0_i32 = arith.constant 0 : i32
    %c0_i32_0 = arith.constant 0 : i32
    %c0_i32_1 = arith.constant 0 : i32
    return %c0_i32, %c0_i32_0 : i32, i32
  }
  func.func @transform_1(%arg0: i32) -> (i32, i32, i32) {
    %c0_i32 = arith.constant 0 : i32
    %c0_i32_0 = arith.constant 0 : i32
    %c0_i32_1 = arith.constant 0 : i32
    %c0_i32_2 = arith.constant 0 : i32
    return %c0_i32, %c0_i32_0, %c0_i32_1 : i32, i32, i32
  }
  func.func @transform_2(%arg0: i32) -> (i32, i32) {
    %c0_i32 = arith.constant 0 : i32
    %c0_i32_0 = arith.constant 0 : i32
    %c0_i32_1 = arith.constant 0 : i32
    return %c0_i32, %c0_i32_0 : i32, i32
  }
  func.func @transform_3(%arg0: i32) -> (i32, i32) {
    %c0_i32 = arith.constant 0 : i32
    %c0_i32_0 = arith.constant 0 : i32
    %c0_i32_1 = arith.constant 0 : i32
    return %c0_i32, %c0_i32_0 : i32, i32
  }
  func.func @transform_4(%arg0: i32) -> (i32, i32) {
    %c0_i32 = arith.constant 0 : i32
    %c0_i32_0 = arith.constant 0 : i32
    %c0_i32_1 = arith.constant 0 : i32
    return %c0_i32, %c0_i32_0 : i32, i32
  }
  func.func @transform_5(%arg0: i32) -> (i32, i32) {
    %c0_i32 = arith.constant 0 : i32
    %c0_i32_0 = arith.constant 0 : i32
    %c0_i32_1 = arith.constant 0 : i32
    return %c0_i32, %c0_i32_0 : i32, i32
  }
  func.func @transform_6(%arg0: i32) -> (i32, i32) {
    %c0_i32 = arith.constant 0 : i32
    %c0_i32_0 = arith.constant 0 : i32
    %c0_i32_1 = arith.constant 0 : i32
    return %c0_i32, %c0_i32_0 : i32, i32
  }
  func.func @transform_7(%arg0: i32) -> (i32, i32) {
    %c0_i32 = arith.constant 0 : i32
    %c0_i32_0 = arith.constant 0 : i32
    %c0_i32_1 = arith.constant 0 : i32
    return %c0_i32, %c0_i32_0 : i32, i32
  }
  func.func @transform_8(%arg0: i32) -> (i32, i32) {
    %c0_i32 = arith.constant 0 : i32
    %c0_i32_0 = arith.constant 0 : i32
    %c0_i32_1 = arith.constant 0 : i32
    return %c0_i32, %c0_i32_0 : i32, i32
  }
  func.func @transform_9(%arg0: i32) -> (i32, i32) {
    %c0_i32 = arith.constant 0 : i32
    %c0_i32_0 = arith.constant 0 : i32
    %c0_i32_1 = arith.constant 0 : i32
    return %c0_i32, %c0_i32_0 : i32, i32
  }
  func.func @transform_10(%arg0: i32) -> (i32, i32, i32) {
    %c0_i32 = arith.constant 0 : i32
    %c0_i32_0 = arith.constant 0 : i32
    %c0_i32_1 = arith.constant 0 : i32
    %c0_i32_2 = arith.constant 0 : i32
    return %c0_i32, %c0_i32_0, %c0_i32_1 : i32, i32, i32
  }
}

</mosaic_0001>

<llo_original>
// kernel: tpu_custom_call.1
$region0: #{tpu_custom_call.1}
  #allocation0 [shape = 'u32[]', space=smem, size = 0x4, offset = 0x4, fixed_abs, tag = 'smem constant byte address 0x4 - core index']
  #allocation1 [shape = 'u32[144,128]{1,0:T(1,128)}', space=vmem, size = 0x12000, scoped, tag = 'internal scratch']
  #allocation2 [shape = 'f32[2,8,362]{2,1,0:T(8,128)}', space=vmem, size = 0x6000, scoped, tag = 'scratch operand']
  #allocation3 [shape = 'f32[2,72,324]{2,1,0:T(8,128)}', space=vmem, size = 0x36000, scoped, tag = 'scratch operand']
  #allocation4 [shape = 'f32[2,4,362]{2,1,0:T(4,128)}', space=vmem, size = 0x3000, scoped, tag = 'scratch operand']
  #allocation5 [shape = 'f32[2,36,324]{2,1,0:T(8,128)}', space=vmem, size = 0x1e000, scoped, tag = 'scratch operand']
  %s0 = inlined_call_operand.vmem [shape: f32[8,64], index: 0, kind: input, shape index: {}]
  %s1 = inlined_call_operand.hbm [shape: f32[2,4,324], index: 1, kind: input, shape index: {}]
  %s2 = inlined_call_operand.hbm [shape: f32[64,324], index: 2, kind: input, shape index: {}]
  %s3 = inlined_call_operand.vmem [shape: f32[1,324], index: 3, kind: input, shape index: {}]
  %s4 = inlined_call_operand.vmem [shape: f32[4,72], index: 4, kind: input, shape index: {}]
  %s5 = inlined_call_operand.vmem [shape: f32[4,1], index: 5, kind: input, shape index: {}]
  %s6 = inlined_call_operand.vmem [shape: f32[4,1], index: 6, kind: input, shape index: {}]
  %s7 = inlined_call_operand.vmem [shape: f32[4,36], index: 7, kind: input, shape index: {}]
  %s8 = inlined_call_operand.vmem [shape: f32[4,1], index: 8, kind: input, shape index: {}]
  %s9 = inlined_call_operand.vmem [shape: f32[4,1], index: 9, kind: input, shape index: {}]
  %s10 = inlined_call_operand.hbm [shape: f32[2,4,324], index: 10, kind: output, shape index: {}]
  %s11 = sld [smem:[#allocation0]]
  $region58: #{tpu_custom_call.1} parent=0
    _
  %s13 = ssub.s32 1, %s11
  %s14 = scalar_select 0, %s13, %s11
  $region1: #{tpu_custom_call.1} parent=0
    #allocation6 [shape = 'u8[12288]{0}', space=vmem, size = 0x3000, scoped, tag = 'input window, operand 1, single buffered']
    #allocation7 [shape = 's32[1]{0}', space=sflag, size = 0x4, scoped, tag = 'scoped memory for tpu_custom_call.1']
    #allocation8 [shape = 's32[1]{0}', space=sflag, size = 0x4, scoped, tag = 'scoped memory for tpu_custom_call.1']
    #allocation9 [shape = 'u8[98304]{0}', space=vmem, size = 0x18000, scoped, tag = 'input window, operand 2, single buffered']
    #allocation10 [shape = 's32[1]{0}', space=sflag, size = 0x4, scoped, tag = 'scoped memory for tpu_custom_call.1']
    #allocation11 [shape = 'u8[12288]{0}', space=vmem, size = 0x3000, scoped, tag = 'output window, operand 0, single buffered']
    %15 = vsyncpa [#allocation7], 0
    %16 = vsyncpa [#allocation10], 0
    %17 = vsyncpa [#allocation8], 0
    // Predicated region
    $region2: #{tpu_custom_call.1} parent=1 // pred_check
      _
    $region3: #{tpu_custom_call.1} parent=1 // pred_check_branch
      %19 = sbr.rel (0) target = $region5
    $region4: #{tpu_custom_call.1} parent=1 // pred_region
      _
    $region5: #{tpu_custom_call.1} parent=1 // pred_fallthru
      _
    // Predicated region
    $region6: #{tpu_custom_call.1} parent=1 // pred_check
      _
    $region7: #{tpu_custom_call.1} parent=1 // pred_check_branch
      %21 = sbr.rel (0) target = $region9
    $region8: #{tpu_custom_call.1} parent=1 // pred_region
      %s23 = ssub.s32 384, 384
      %24 = vsyncadd [#allocation7], %s23
      %s25 = sshll.u32 [#allocation6], 4
      %s26 = int_to_ptr.vmem [resolvable:$true] %s25
      %31 = dma.hbm_to_vmem [thread:$0]  %s1, 384, %s26, [#allocation7], 192, 192, 12
    $region9: #{tpu_custom_call.1} parent=1 // pred_fallthru
      _
    // Predicated region
    $region10: #{tpu_custom_call.1} parent=1 // pred_check
      _
    $region11: #{tpu_custom_call.1} parent=1 // pred_check_branch
      %33 = sbr.rel (0) target = $region13
    $region12: #{tpu_custom_call.1} parent=1 // pred_region
      %s35 = ssub.s32 3072, 3072
      %36 = vsyncadd [#allocation10], %s35
      %s37 = sshll.u32 [#allocation9], 4
      %s38 = int_to_ptr.vmem [resolvable:$true] %s37
      %43 = dma.hbm_to_vmem [thread:$0]  %s2, 3072, %s38, [#allocation10], 384, 384, 24
    $region13: #{tpu_custom_call.1} parent=1 // pred_fallthru
      _
    // Predicated region
    $region14: #{tpu_custom_call.1} parent=1 // pred_check
      _
    $region15: #{tpu_custom_call.1} parent=1 // pred_check_branch
      %45 = sbr.rel (0) target = $region17
    $region16: #{tpu_custom_call.1} parent=1 // pred_region
      _
    $region17: #{tpu_custom_call.1} parent=1 // pred_fallthru
      _
    // Predicated region
    $region18: #{tpu_custom_call.1} parent=1 // pred_check
      _
    $region19: #{tpu_custom_call.1} parent=1 // pred_check_branch
      %47 = sbr.rel (0) target = $region21
    $region20: #{tpu_custom_call.1} parent=1 // pred_region
      _
    $region21: #{tpu_custom_call.1} parent=1 // pred_fallthru
      _
    // Predicated region
    $region22: #{tpu_custom_call.1} parent=1 // pred_check
      _
    $region23: #{tpu_custom_call.1} parent=1 // pred_check_branch
      %49 = sbr.rel (0) target = $region25
    $region24: #{tpu_custom_call.1} parent=1 // pred_region
      _
    $region25: #{tpu_custom_call.1} parent=1 // pred_fallthru
      _
    // Predicated region
    $region26: #{tpu_custom_call.1} parent=1 // pred_check
      _
    $region27: #{tpu_custom_call.1} parent=1 // pred_check_branch
      %51 = sbr.rel (0) target = $region29
    $region28: #{tpu_custom_call.1} parent=1 // pred_region
      _
    $region29: #{tpu_custom_call.1} parent=1 // pred_fallthru
      _
    // Predicated region
    $region30: #{tpu_custom_call.1} parent=1 // pred_check
      _
    $region31: #{tpu_custom_call.1} parent=1 // pred_check_branch
      %53 = sbr.rel (0) target = $region33
    $region32: #{tpu_custom_call.1} parent=1 // pred_region
      _
    $region33: #{tpu_custom_call.1} parent=1 // pred_fallthru
      _
    // Predicated region
    $region34: #{tpu_custom_call.1} parent=1 // pred_check
      _
    $region35: #{tpu_custom_call.1} parent=1 // pred_check_branch
      %55 = sbr.rel (0) target = $region37
    $region36: #{tpu_custom_call.1} parent=1 // pred_region
      _
    $region37: #{tpu_custom_call.1} parent=1 // pred_fallthru
      _
    // Predicated region
    $region38: #{tpu_custom_call.1} parent=1 // pred_check
      _
    $region39: #{tpu_custom_call.1} parent=1 // pred_check_branch
      %57 = sbr.rel (0) target = $region41
    $region40: #{tpu_custom_call.1} parent=1 // pred_region
      _
    $region41: #{tpu_custom_call.1} parent=1 // pred_fallthru
      _
    // Predicated region
    $region42: #{tpu_custom_call.1} parent=1 // pred_check
      _
    $region43: #{tpu_custom_call.1} parent=1 // pred_check_branch
      %59 = sbr.rel (0) target = $region45
    $region44: #{tpu_custom_call.1} parent=1 // pred_region
      %60 = dma.done [#allocation7], 384
    $region45: #{tpu_custom_call.1} parent=1 // pred_fallthru
      _
    // Predicated region
    $region46: #{tpu_custom_call.1} parent=1 // pred_check
      _
    $region47: #{tpu_custom_call.1} parent=1 // pred_check_branch
      %62 = sbr.rel (0) target = $region49
    $region48: #{tpu_custom_call.1} parent=1 // pred_region
      %63 = dma.done [#allocation10], 3072
    $region49: #{tpu_custom_call.1} parent=1 // pred_fallthru
      _
    %v64 = vld [vmem:[%s3] sm:$0x7]
    %vm65 = vcmask 154624
    %66 = vst.msk [vmem:[#allocation2] sm:$0xff] %vm65, 0.0
    %67 = vst.msk [vmem:[#allocation2 + $0x18] sm:$0xff] %vm65, 0.0
    %vm68 = vcmask 868024
    %69 = vst.msk [vmem:[#allocation2 + $0x10] sm:$0xff] %vm68, 0.0
    %70 = vst.msk [vmem:[#allocation2 + $0x28] sm:$0xff] %vm68, 0.0
    %vm71 = vcmask 150528
    %72 = vst.msk [vmem:[#allocation4] sm:$0xf] %vm71, 0.0
    %73 = vst.msk [vmem:[#allocation4 + $0xc] sm:$0xf] %vm71, 0.0
    %vm74 = vcmask 863928
    %75 = vst.msk [vmem:[#allocation4 + $0x8] sm:$0xf] %vm74, 0.0
    %76 = vst.msk [vmem:[#allocation4 + $0x14] sm:$0xf] %vm74, 0.0
    %v77 = vld [vmem:[%s0] sm:$0xff]
    %v78 = vld [vmem:[#allocation9] sm:$0xff]
    %v79 = vld [vmem:[#allocation9 + $0x8] sm:$0xff]
    %v80 = vld [vmem:[#allocation9 + $0x10] sm:$0xff]
    %v81 = vld [vmem:[#allocation9 + $0x18] sm:$0xff]
    %v82 = vld [vmem:[#allocation9 + $0x20] sm:$0xff]
    %v83 = vld [vmem:[#allocation9 + $0x28] sm:$0xff]
    %v84 = vld [vmem:[#allocation9 + $0x30] sm:$0xff]
    %v85 = vld [vmem:[#allocation9 + $0x38] sm:$0xff]
    %v86 = vld [vmem:[#allocation9 + $0x40] sm:$0xff]
    %v87 = vld [vmem:[#allocation9 + $0x48] sm:$0xff]
    %v88 = vld [vmem:[#allocation9 + $0x50] sm:$0xff]
    %v89 = vld [vmem:[#allocation9 + $0x58] sm:$0xff]
    %v90 = vld [vmem:[#allocation9 + $0x60] sm:$0xff]
    %v91 = vld [vmem:[#allocation9 + $0x68] sm:$0xff]
    %v92 = vld [vmem:[#allocation9 + $0x70] sm:$0xff]
    %v93 = vld [vmem:[#allocation9 + $0x78] sm:$0xff]
    %v94 = vld [vmem:[#allocation9 + $0x80] sm:$0xff]
    %v95 = vld [vmem:[#allocation9 + $0x88] sm:$0xff]
    %v96 = vld [vmem:[#allocation9 + $0x90] sm:$0xff]
    %v97 = vld [vmem:[#allocation9 + $0x98] sm:$0xff]
    %v98 = vld [vmem:[#allocation9 + $0xa0] sm:$0xff]
    %v99 = vld [vmem:[#allocation9 + $0xa8] sm:$0xff]
    %v100 = vld [vmem:[#allocation9 + $0xb0] sm:$0xff]
    %v101 = vld [vmem:[#allocation9 + $0xb8] sm:$0xff]
    %vm102 = vcmask 523264
    %v104 = vsel %vm102, %v77, 0
    %106 = vmatprep.subr.mxu0 0.0
    %107 = vmatpush1.msra.mxu0 0.0
    %108 = vmatprep.subr.mxu0 0.0
    %109 = vmatpush1.msra.mxu0 0.0
    %110 = vmatprep.subr.mxu0 0.0
    %111 = vmatpush1.msra.mxu0 0.0
    %112 = vmatprep.subr.mxu0 0.0
    %113 = vmatpush1.msra.mxu0 0.0
    %114 = vmatprep.subr.mxu0 0.0
    %115 = vmatpush1.msra.mxu0 0.0
    %116 = vmatprep.subr.mxu0 0.0
    %117 = vmatpush1.msra.mxu0 0.0
    %118 = vmatprep.subr.mxu0 0.0
    %119 = vmatpush1.msra.mxu0 0.0
    %120 = vmatprep.subr.mxu0 0.0
    %121 = vmatpush1.msra.mxu0 0.0
    %122 = vmatprep.subr.mxu0 %v100
    %123 = vmatpush1.msra.mxu0 %v99
    %124 = vmatprep.subr.mxu0 %v97
    %125 = vmatpush1.msra.mxu0 %v96
    %126 = vmatprep.subr.mxu0 %v94
    %127 = vmatpush1.msra.mxu0 %v93
    %128 = vmatprep.subr.mxu0 %v91
    %129 = vmatpush1.msra.mxu0 %v90
    %130 = vmatprep.subr.mxu0 %v88
    %131 = vmatpush1.msra.mxu0 %v87
    %132 = vmatprep.subr.mxu0 %v85
    %133 = vmatpush1.msra.mxu0 %v84
    %134 = vmatprep.subr.mxu0 %v82
    %135 = vmatpush1.msra.mxu0 %v81
    %136 = vmatprep.subr.mxu0 %v79
    %137 = vmatpush1.msra.mxu0 %v78
    %138 = vmatprep.subr.mxu0 0.0
    %139 = vmatpush2.msra.mxu0 0.0
    %140 = vmatprep.subr.mxu0 0.0
    %141 = vmatpush2.msra.mxu0 0.0
    %142 = vmatprep.subr.mxu0 0.0
    %143 = vmatpush2.msra.mxu0 0.0
    %144 = vmatprep.subr.mxu0 0.0
    %145 = vmatpush2.msra.mxu0 0.0
    %146 = vmatprep.subr.mxu0 0.0
    %147 = vmatpush2.msra.mxu0 0.0
    %148 = vmatprep.subr.mxu0 0.0
    %149 = vmatpush2.msra.mxu0 0.0
    %150 = vmatprep.subr.mxu0 0.0
    %151 = vmatpush2.msra.mxu0 0.0
    %152 = vmatprep.subr.mxu0 0.0
    %153 = vmatpush2.msra.mxu0 0.0
    %154 = vmatprep.subr.mxu0 0.0
    %155 = vmatpush2.msra.mxu0 0.0
    %156 = vmatprep.subr.mxu0 0.0
    %157 = vmatpush2.msra.mxu0 0.0
    %158 = vmatprep.subr.mxu0 0.0
    %159 = vmatpush2.msra.mxu0 0.0
    %160 = vmatprep.subr.mxu0 0.0
    %161 = vmatpush2.msra.mxu0 0.0
    %162 = vmatprep.subr.mxu0 0.0
    %163 = vmatpush2.msra.mxu0 0.0
    %164 = vmatprep.subr.mxu0 0.0
    %165 = vmatpush2.msra.mxu0 0.0
    %166 = vmatprep.subr.mxu0 0.0
    %167 = vmatpush2.msra.mxu0 0.0
    %168 = vmatprep.subr.mxu0 0.0
    %169 = vmatpush2.msra.mxu0 0.0
    %170 = vmatprep.mubr.f32.mxu0 0.0
    %171 = vmatmul.mubr.f32.gmra.mxu0 %v104
    %v172 = vpop.f32.mrf.mxu0
    %v173 = vadd.f32 0.0, %v172
    %v174 = vpop.f32.mrf.mxu0
    %v175 = vadd.f32 0.0, %v174
    %176 = vdwg.mxu0
    %177 = vmatprep.subr.mxu0 0.0
    %178 = vmatpush1.msra.mxu0 0.0
    %179 = vmatprep.subr.mxu0 0.0
    %180 = vmatpush1.msra.mxu0 0.0
    %181 = vmatprep.subr.mxu0 0.0
    %182 = vmatpush1.msra.mxu0 0.0
    %183 = vmatprep.subr.mxu0 0.0
    %184 = vmatpush1.msra.mxu0 0.0
    %185 = vmatprep.subr.mxu0 0.0
    %186 = vmatpush1.msra.mxu0 0.0
    %187 = vmatprep.subr.mxu0 0.0
    %188 = vmatpush1.msra.mxu0 0.0
    %189 = vmatprep.subr.mxu0 0.0
    %190 = vmatpush1.msra.mxu0 0.0
    %191 = vmatprep.subr.mxu0 0.0
    %192 = vmatpush1.msra.mxu0 0.0
    %193 = vmatprep.subr.mxu0 0.0
    %194 = vmatpush1.msra.mxu0 %v101
    %195 = vmatprep.subr.mxu0 0.0
    %196 = vmatpush1.msra.mxu0 %v98
    %197 = vmatprep.subr.mxu0 0.0
    %198 = vmatpush1.msra.mxu0 %v95
    %199 = vmatprep.subr.mxu0 0.0
    %200 = vmatpush1.msra.mxu0 %v92
    %201 = vmatprep.subr.mxu0 0.0
    %202 = vmatpush1.msra.mxu0 %v89
    %203 = vmatprep.subr.mxu0 0.0
    %204 = vmatpush1.msra.mxu0 %v86
    %205 = vmatprep.subr.mxu0 0.0
    %206 = vmatpush1.msra.mxu0 %v83
    %207 = vmatprep.subr.mxu0 0.0
    %208 = vmatpush1.msra.mxu0 %v80
    %209 = vmatprep.subr.mxu0 0.0
    %210 = vmatpush2.msra.mxu0 0.0
    %211 = vmatprep.subr.mxu0 0.0
    %212 = vmatpush2.msra.mxu0 0.0
    %213 = vmatprep.subr.mxu0 0.0
    %214 = vmatpush2.msra.mxu0 0.0
    %215 = vmatprep.subr.mxu0 0.0
    %216 = vmatpush2.msra.mxu0 0.0
    %217 = vmatprep.subr.mxu0 0.0
    %218 = vmatpush2.msra.mxu0 0.0
    %219 = vmatprep.subr.mxu0 0.0
    %220 = vmatpush2.msra.mxu0 0.0
    %221 = vmatprep.subr.mxu0 0.0
    %222 = vmatpush2.msra.mxu0 0.0
    %223 = vmatprep.subr.mxu0 0.0
    %224 = vmatpush2.msra.mxu0 0.0
    %225 = vmatprep.subr.mxu0 0.0
    %226 = vmatpush2.msra.mxu0 0.0
    %227 = vmatprep.subr.mxu0 0.0
    %228 = vmatpush2.msra.mxu0 0.0
    %229 = vmatprep.subr.mxu0 0.0
    %230 = vmatpush2.msra.mxu0 0.0
    %231 = vmatprep.subr.mxu0 0.0
    %232 = vmatpush2.msra.mxu0 0.0
    %233 = vmatprep.subr.mxu0 0.0
    %234 = vmatpush2.msra.mxu0 0.0
    %235 = vmatprep.subr.mxu0 0.0
    %236 = vmatpush2.msra.mxu0 0.0
    %237 = vmatprep.subr.mxu0 0.0
    %238 = vmatpush2.msra.mxu0 0.0
    %239 = vmatprep.subr.mxu0 0.0
    %240 = vmatpush2.msra.mxu0 0.0
    %241 = vmatprep.mubr.f32.mxu0 0.0
    %242 = vmatmul.mubr.f32.gmra.mxu0 %v104
    %v243 = vpop.f32.mrf.mxu0
    %v244 = vadd.f32 0.0, %v243
    %v245 = vpop.f32.mrf.mxu0
    %246 = vdwg.mxu0
    %v247 = vld [vmem:[#allocation6] sm:$0xff]
    %v248 = vld [vmem:[#allocation6 + $0x8] sm:$0xf]
    %v249 = vld [vmem:[#allocation6 + $0xc] sm:$0xff]
    %v250 = vld [vmem:[#allocation6 + $0x14] sm:$0xf]
    %v255 = vcombine.high %v247, %v247
    %v256 = vcombine.high %v249, %v249
    %257 = vrot.lane.b32.xlu0 %v247, 19
    %v258 = vpop.permute.xlu0 %257
    %259 = vrot.lane.b32.xlu0 %v255, 19
    %v260 = vpop.permute.xlu0 %259
    %261 = vrot.lane.b32.xlu0 %v248, 19
    %v262 = vpop.permute.xlu0 %261
    %263 = vrot.lane.b32.xlu0 %v249, 19
    %v264 = vpop.permute.xlu0 %263
    %265 = vrot.lane.b32.xlu0 %v256, 19
    %v266 = vpop.permute.xlu0 %265
    %267 = vrot.lane.b32.xlu0 %v250, 19
    %v268 = vpop.permute.xlu0 %267
    %v269 = vsel %vm65, %v258, %v260
    %v270 = vsel %vm65, %v260, %v262
    %v271 = vsel %vm65, %v264, %v266
    %v272 = vsel %vm65, %v266, %v268
    %vm279 = vcmask 1043608
    %280 = vst.msk [vmem:[#allocation2] sm:$0xf] %vm279, %v258
    %281 = vst [vmem:[#allocation2 + $0x8] sm:$0xf] %v269
    %vm282 = vcmask 707584
    %283 = vst.msk [vmem:[#allocation2 + $0x10] sm:$0xf] %vm282, %v270
    %284 = vst.msk [vmem:[#allocation2 + $0x18] sm:$0xf] %vm279, %v264
    %285 = vst [vmem:[#allocation2 + $0x20] sm:$0xf] %v271
    %286 = vst.msk [vmem:[#allocation2 + $0x28] sm:$0xf] %vm282, %v272
    %v290 = vrot.slane %v173, 4
    %v291 = vrot.slane %v175, 4
    %v292 = vrot.slane %v244, 4
    %293 = vrot.lane.b32.xlu0 %v290, 19
    %v294 = vpop.permute.xlu0 %293
    %295 = vrot.lane.b32.xlu0 %v291, 19
    %v296 = vpop.permute.xlu0 %295
    %297 = vrot.lane.b32.xlu0 %v292, 19
    %v298 = vpop.permute.xlu0 %297
    %v299 = vsel %vm65, %v294, %v296
    %v300 = vsel %vm65, %v296, %v298
    %vm304 = vcmask 1047708
    %305 = vst.msk [vmem:[#allocation2] sm:$0xf0] %vm304, %v294
    %306 = vst [vmem:[#allocation2 + $0x8] sm:$0xf0] %v299
    %vm307 = vcmask 711684
    %308 = vst.msk [vmem:[#allocation2 + $0x10] sm:$0xf0] %vm307, %v300
    %309 = vrot.lane.b32.xlu0 %v173, 19
    %v310 = vpop.permute.xlu0 %309
    %311 = vrot.lane.b32.xlu0 %v175, 19
    %v312 = vpop.permute.xlu0 %311
    %313 = vrot.lane.b32.xlu0 %v244, 19
    %v314 = vpop.permute.xlu0 %313
    %v315 = vsel %vm65, %v310, %v312
    %v316 = vsel %vm65, %v312, %v314
    %s320 = scalar_lea.vmem [#allocation2], 24
    %321 = vst.msk [vmem:[%s320] sm:$0xf0] %vm304, %v310
    %322 = vst [vmem:[%s320 + $0x8] sm:$0xf0] %v315
    %323 = vst.msk [vmem:[%s320 + $0x10] sm:$0xf0] %vm307, %v316
    %v324 = vld [vmem:[#allocation2] sm:$0xff]
    %v325 = vld [vmem:[#allocation2 + $0x8] sm:$0xff]
    %v326 = vld [vmem:[#allocation2 + $0x10] sm:$0xff]
    %327 = vst [vmem:[#allocation3] sm:$0xff] %v324
    %328 = vst [vmem:[#allocation3 + $0x8] sm:$0xff] %v325
    %vm329 = vcmask 556032
    %330 = vst.msk [vmem:[#allocation3 + $0x10] sm:$0xff] %vm329, %v326
    %v331 = vld [vmem:[#allocation2] sm:$0xff]
    %v332 = vld [vmem:[#allocation2 + $0x8] sm:$0xff]
    %v333 = vld [vmem:[#allocation2 + $0x10] sm:$0xff]
    %337 = vrot.lane.b32.xlu0 %v331, 127
    %v338 = vpop.permute.xlu0 %337
    %339 = vrot.lane.b32.xlu0 %v332, 127
    %v340 = vpop.permute.xlu0 %339
    %341 = vrot.lane.b32.xlu0 %v333, 127
    %v342 = vpop.permute.xlu0 %341
    %vm343 = vcmask 1039360
    %v344 = vsel %vm343, %v338, %v340
    %v345 = vsel %vm343, %v340, %v342
    %349 = vst [vmem:[#allocation3 + $0x18] sm:$0xff] %v344
    %350 = vst [vmem:[#allocation3 + $0x20] sm:$0xff] %v345
    %351 = vst.msk [vmem:[#allocation3 + $0x28] sm:$0xff] %vm329, %v342
    %v352 = vld [vmem:[#allocation2] sm:$0xff]
    %v353 = vld [vmem:[#allocation2 + $0x8] sm:$0xff]
    %v354 = vld [vmem:[#allocation2 + $0x10] sm:$0xff]
    %358 = vrot.lane.b32.xlu0 %v352, 126
    %v359 = vpop.permute.xlu0 %358
    %360 = vrot.lane.b32.xlu0 %v353, 126
    %v361 = vpop.permute.xlu0 %360
    %362 = vrot.lane.b32.xlu0 %v354, 126
    %v363 = vpop.permute.xlu0 %362
    %vm364 = vcmask 1031168
    %v365 = vsel %vm364, %v359, %v361
    %v366 = vsel %vm364, %v361, %v363
    %370 = vst [vmem:[#allocation3 + $0x30] sm:$0xff] %v365
    %371 = vst [vmem:[#allocation3 + $0x38] sm:$0xff] %v366
    %372 = vst.msk [vmem:[#allocation3 + $0x40] sm:$0xff] %vm329, %v363
    %v373 = vld [vmem:[#allocation2] sm:$0xff]
    %v374 = vld [vmem:[#allocation2 + $0x8] sm:$0xff]
    %v375 = vld [vmem:[#allocation2 + $0x10] sm:$0xff]
    %379 = vrot.lane.b32.xlu0 %v373, 110
    %v380 = vpop.permute.xlu0 %379
    %381 = vrot.lane.b32.xlu0 %v374, 110
    %v382 = vpop.permute.xlu0 %381
    %383 = vrot.lane.b32.xlu0 %v375, 110
    %v384 = vpop.permute.xlu0 %383
    %vm385 = vcmask 900096
    %v386 = vsel %vm385, %v380, %v382
    %v387 = vsel %vm385, %v382, %v384
    %391 = vst [vmem:[#allocation3 + $0x48] sm:$0xff] %v386
    %392 = vst [vmem:[#allocation3 + $0x50] sm:$0xff] %v387
    %393 = vst.msk [vmem:[#allocation3 + $0x58] sm:$0xff] %vm329, %v384
    %v394 = vld [vmem:[#allocation2] sm:$0xff]
    %v395 = vld [vmem:[#allocation2 + $0x8] sm:$0xff]
    %v396 = vld [vmem:[#allocation2 + $0x10] sm:$0xff]
    %400 = vrot.lane.b32.xlu0 %v394, 109
    %v401 = vpop.permute.xlu0 %400
    %402 = vrot.lane.b32.xlu0 %v395, 109
    %v403 = vpop.permute.xlu0 %402
    %404 = vrot.lane.b32.xlu0 %v396, 109
    %v405 = vpop.permute.xlu0 %404
    %vm406 = vcmask 891904
    %v407 = vsel %vm406, %v401, %v403
    %v408 = vsel %vm406, %v403, %v405
    %412 = vst [vmem:[#allocation3 + $0x60] sm:$0xff] %v407
    %413 = vst [vmem:[#allocation3 + $0x68] sm:$0xff] %v408
    %414 = vst.msk [vmem:[#allocation3 + $0x70] sm:$0xff] %vm329, %v405
    %v415 = vld [vmem:[#allocation2] sm:$0xff]
    %v416 = vld [vmem:[#allocation2 + $0x8] sm:$0xff]
    %v417 = vld [vmem:[#allocation2 + $0x10] sm:$0xff]
    %421 = vrot.lane.b32.xlu0 %v415, 108
    %v422 = vpop.permute.xlu0 %421
    %423 = vrot.lane.b32.xlu0 %v416, 108
    %v424 = vpop.permute.xlu0 %423
    %425 = vrot.lane.b32.xlu0 %v417, 108
    %v426 = vpop.permute.xlu0 %425
    %vm427 = vcmask 883712
    %v428 = vsel %vm427, %v422, %v424
    %v429 = vsel %vm427, %v424, %v426
    %433 = vst [vmem:[#allocation3 + $0x78] sm:$0xff] %v428
    %434 = vst [vmem:[#allocation3 + $0x80] sm:$0xff] %v429
    %435 = vst.msk [vmem:[#allocation3 + $0x88] sm:$0xff] %vm329, %v426
    %v436 = vld [vmem:[#allocation2] sm:$0xff]
    %v437 = vld [vmem:[#allocation2 + $0x8] sm:$0xff]
    %v438 = vld [vmem:[#allocation2 + $0x10] sm:$0xff]
    %442 = vrot.lane.b32.xlu0 %v436, 92
    %v443 = vpop.permute.xlu0 %442
    %444 = vrot.lane.b32.xlu0 %v437, 92
    %v445 = vpop.permute.xlu0 %444
    %446 = vrot.lane.b32.xlu0 %v438, 92
    %v447 = vpop.permute.xlu0 %446
    %vm448 = vcmask 752640
    %v449 = vsel %vm448, %v443, %v445
    %v450 = vsel %vm448, %v445, %v447
    %454 = vst [vmem:[#allocation3 + $0x90] sm:$0xff] %v449
    %455 = vst [vmem:[#allocation3 + $0x98] sm:$0xff] %v450
    %456 = vst.msk [vmem:[#allocation3 + $0xa0] sm:$0xff] %vm329, %v447
    %v457 = vld [vmem:[#allocation2] sm:$0xff]
    %v458 = vld [vmem:[#allocation2 + $0x8] sm:$0xff]
    %v459 = vld [vmem:[#allocation2 + $0x10] sm:$0xff]
    %463 = vrot.lane.b32.xlu0 %v457, 91
    %v464 = vpop.permute.xlu0 %463
    %465 = vrot.lane.b32.xlu0 %v458, 91
    %v466 = vpop.permute.xlu0 %465
    %467 = vrot.lane.b32.xlu0 %v459, 91
    %v468 = vpop.permute.xlu0 %467
    %vm469 = vcmask 744448
    %v470 = vsel %vm469, %v464, %v466
    %v471 = vsel %vm469, %v466, %v468
    %475 = vst [vmem:[#allocation3 + $0xa8] sm:$0xff] %v470
    %476 = vst [vmem:[#allocation3 + $0xb0] sm:$0xff] %v471
    %477 = vst.msk [vmem:[#allocation3 + $0xb8] sm:$0xff] %vm329, %v468
    %v478 = vld [vmem:[#allocation2] sm:$0xff]
    %v479 = vld [vmem:[#allocation2 + $0x8] sm:$0xff]
    %v480 = vld [vmem:[#allocation2 + $0x10] sm:$0xff]
    %484 = vrot.lane.b32.xlu0 %v478, 90
    %v485 = vpop.permute.xlu0 %484
    %486 = vrot.lane.b32.xlu0 %v479, 90
    %v487 = vpop.permute.xlu0 %486
    %488 = vrot.lane.b32.xlu0 %v480, 90
    %v489 = vpop.permute.xlu0 %488
    %vm490 = vcmask 736256
    %v491 = vsel %vm490, %v485, %v487
    %v492 = vsel %vm490, %v487, %v489
    %496 = vst [vmem:[#allocation3 + $0xc0] sm:$0xff] %v491
    %497 = vst [vmem:[#allocation3 + $0xc8] sm:$0xff] %v492
    %498 = vst.msk [vmem:[#allocation3 + $0xd0] sm:$0xff] %vm329, %v489
    %v499 = vld [vmem:[%s4] sm:$0xf]
    %v500 = vld [vmem:[#allocation3] sm:$0xff]
    %v501 = vld [vmem:[#allocation3 + $0x8] sm:$0xff]
    %v502 = vld [vmem:[#allocation3 + $0x10] sm:$0xff]
    %v503 = vld [vmem:[#allocation3 + $0x18] sm:$0xff]
    %v504 = vld [vmem:[#allocation3 + $0x20] sm:$0xff]
    %v505 = vld [vmem:[#allocation3 + $0x28] sm:$0xff]
    %v506 = vld [vmem:[#allocation3 + $0x30] sm:$0xff]
    %v507 = vld [vmem:[#allocation3 + $0x38] sm:$0xff]
    %v508 = vld [vmem:[#allocation3 + $0x40] sm:$0xff]
    %v509 = vld [vmem:[#allocation3 + $0x48] sm:$0xff]
    %v510 = vld [vmem:[#allocation3 + $0x50] sm:$0xff]
    %v511 = vld [vmem:[#allocation3 + $0x58] sm:$0xff]
    %v512 = vld [vmem:[#allocation3 + $0x60] sm:$0xff]
    %v513 = vld [vmem:[#allocation3 + $0x68] sm:$0xff]
    %v514 = vld [vmem:[#allocation3 + $0x70] sm:$0xff]
    %v515 = vld [vmem:[#allocation3 + $0x78] sm:$0xff]
    %v516 = vld [vmem:[#allocation3 + $0x80] sm:$0xff]
    %v517 = vld [vmem:[#allocation3 + $0x88] sm:$0xff]
    %v518 = vld [vmem:[#allocation3 + $0x90] sm:$0xff]
    %v519 = vld [vmem:[#allocation3 + $0x98] sm:$0xff]
    %v520 = vld [vmem:[#allocation3 + $0xa0] sm:$0xff]
    %v521 = vld [vmem:[#allocation3 + $0xa8] sm:$0xff]
    %v522 = vld [vmem:[#allocation3 + $0xb0] sm:$0xff]
    %v523 = vld [vmem:[#allocation3 + $0xb8] sm:$0xff]
    %v524 = vld [vmem:[#allocation3 + $0xc0] sm:$0xff]
    %v525 = vld [vmem:[#allocation3 + $0xc8] sm:$0xff]
    %v526 = vld [vmem:[#allocation3 + $0xd0] sm:$0xff]
    %vm527 = vcmask 588800
    %v529 = vsel %vm527, %v499, 0
    %531 = vmatprep.subr.mxu0 0.0
    %532 = vmatpush1.msra.mxu0 0.0
    %533 = vmatprep.subr.mxu0 0.0
    %534 = vmatpush1.msra.mxu0 0.0
    %535 = vmatprep.subr.mxu0 0.0
    %536 = vmatpush1.msra.mxu0 0.0
    %537 = vmatprep.subr.mxu0 0.0
    %538 = vmatpush1.msra.mxu0 0.0
    %539 = vmatprep.subr.mxu0 0.0
    %540 = vmatpush1.msra.mxu0 0.0
    %541 = vmatprep.subr.mxu0 0.0
    %542 = vmatpush1.msra.mxu0 0.0
    %543 = vmatprep.subr.mxu0 0.0
    %544 = vmatpush1.msra.mxu0 0.0
    %545 = vmatprep.subr.mxu0 %v525
    %546 = vmatpush1.msra.mxu0 %v524
    %547 = vmatprep.subr.mxu0 %v522
    %548 = vmatpush1.msra.mxu0 %v521
    %549 = vmatprep.subr.mxu0 %v519
    %550 = vmatpush1.msra.mxu0 %v518
    %551 = vmatprep.subr.mxu0 %v516
    %552 = vmatpush1.msra.mxu0 %v515
    %553 = vmatprep.subr.mxu0 %v513
    %554 = vmatpush1.msra.mxu0 %v512
    %555 = vmatprep.subr.mxu0 %v510
    %556 = vmatpush1.msra.mxu0 %v509
    %557 = vmatprep.subr.mxu0 %v507
    %558 = vmatpush1.msra.mxu0 %v506
    %559 = vmatprep.subr.mxu0 %v504
    %560 = vmatpush1.msra.mxu0 %v503
    %561 = vmatprep.subr.mxu0 %v501
    %562 = vmatpush1.msra.mxu0 %v500
    %563 = vmatprep.subr.mxu0 0.0
    %564 = vmatpush2.msra.mxu0 0.0
    %565 = vmatprep.subr.mxu0 0.0
    %566 = vmatpush2.msra.mxu0 0.0
    %567 = vmatprep.subr.mxu0 0.0
    %568 = vmatpush2.msra.mxu0 0.0
    %569 = vmatprep.subr.mxu0 0.0
    %570 = vmatpush2.msra.mxu0 0.0
    %571 = vmatprep.subr.mxu0 0.0
    %572 = vmatpush2.msra.mxu0 0.0
    %573 = vmatprep.subr.mxu0 0.0
    %574 = vmatpush2.msra.mxu0 0.0
    %575 = vmatprep.subr.mxu0 0.0
    %576 = vmatpush2.msra.mxu0 0.0
    %577 = vmatprep.subr.mxu0 0.0
    %578 = vmatpush2.msra.mxu0 0.0
    %579 = vmatprep.subr.mxu0 0.0
    %580 = vmatpush2.msra.mxu0 0.0
    %581 = vmatprep.subr.mxu0 0.0
    %582 = vmatpush2.msra.mxu0 0.0
    %583 = vmatprep.subr.mxu0 0.0
    %584 = vmatpush2.msra.mxu0 0.0
    %585 = vmatprep.subr.mxu0 0.0
    %586 = vmatpush2.msra.mxu0 0.0
    %587 = vmatprep.subr.mxu0 0.0
    %588 = vmatpush2.msra.mxu0 0.0
    %589 = vmatprep.subr.mxu0 0.0
    %590 = vmatpush2.msra.mxu0 0.0
    %591 = vmatprep.subr.mxu0 0.0
    %592 = vmatpush2.msra.mxu0 0.0
    %593 = vmatprep.subr.mxu0 0.0
    %594 = vmatpush2.msra.mxu0 0.0
    %595 = vmatprep.mubr.f32.mxu0 0.0
    %596 = vmatmul.mubr.f32.gmra.mxu0 %v529
    %v597 = vpop.f32.mrf.mxu0
    %v598 = vadd.f32 0.0, %v597
    %v599 = vpop.f32.mrf.mxu0
    %v600 = vadd.f32 0.0, %v599
    %601 = vdwg.mxu0
    %602 = vmatprep.subr.mxu0 0.0
    %603 = vmatpush1.msra.mxu0 0.0
    %604 = vmatprep.subr.mxu0 0.0
    %605 = vmatpush1.msra.mxu0 0.0
    %606 = vmatprep.subr.mxu0 0.0
    %607 = vmatpush1.msra.mxu0 0.0
    %608 = vmatprep.subr.mxu0 0.0
    %609 = vmatpush1.msra.mxu0 0.0
    %610 = vmatprep.subr.mxu0 0.0
    %611 = vmatpush1.msra.mxu0 0.0
    %612 = vmatprep.subr.mxu0 0.0
    %613 = vmatpush1.msra.mxu0 0.0
    %614 = vmatprep.subr.mxu0 0.0
    %615 = vmatpush1.msra.mxu0 0.0
    %616 = vmatprep.subr.mxu0 0.0
    %617 = vmatpush1.msra.mxu0 %v526
    %618 = vmatprep.subr.mxu0 0.0
    %619 = vmatpush1.msra.mxu0 %v523
    %620 = vmatprep.subr.mxu0 0.0
    %621 = vmatpush1.msra.mxu0 %v520
    %622 = vmatprep.subr.mxu0 0.0
    %623 = vmatpush1.msra.mxu0 %v517
    %624 = vmatprep.subr.mxu0 0.0
    %625 = vmatpush1.msra.mxu0 %v514
    %626 = vmatprep.subr.mxu0 0.0
    %627 = vmatpush1.msra.mxu0 %v511
    %628 = vmatprep.subr.mxu0 0.0
    %629 = vmatpush1.msra.mxu0 %v508
    %630 = vmatprep.subr.mxu0 0.0
    %631 = vmatpush1.msra.mxu0 %v505
    %632 = vmatprep.subr.mxu0 0.0
    %633 = vmatpush1.msra.mxu0 %v502
    %634 = vmatprep.subr.mxu0 0.0
    %635 = vmatpush2.msra.mxu0 0.0
    %636 = vmatprep.subr.mxu0 0.0
    %637 = vmatpush2.msra.mxu0 0.0
    %638 = vmatprep.subr.mxu0 0.0
    %639 = vmatpush2.msra.mxu0 0.0
    %640 = vmatprep.subr.mxu0 0.0
    %641 = vmatpush2.msra.mxu0 0.0
    %642 = vmatprep.subr.mxu0 0.0
    %643 = vmatpush2.msra.mxu0 0.0
    %644 = vmatprep.subr.mxu0 0.0
    %645 = vmatpush2.msra.mxu0 0.0
    %646 = vmatprep.subr.mxu0 0.0
    %647 = vmatpush2.msra.mxu0 0.0
    %648 = vmatprep.subr.mxu0 0.0
    %649 = vmatpush2.msra.mxu0 0.0
    %650 = vmatprep.subr.mxu0 0.0
    %651 = vmatpush2.msra.mxu0 0.0
    %652 = vmatprep.subr.mxu0 0.0
    %653 = vmatpush2.msra.mxu0 0.0
    %654 = vmatprep.subr.mxu0 0.0
    %655 = vmatpush2.msra.mxu0 0.0
    %656 = vmatprep.subr.mxu0 0.0
    %657 = vmatpush2.msra.mxu0 0.0
    %658 = vmatprep.subr.mxu0 0.0
    %659 = vmatpush2.msra.mxu0 0.0
    %660 = vmatprep.subr.mxu0 0.0
    %661 = vmatpush2.msra.mxu0 0.0
    %662 = vmatprep.subr.mxu0 0.0
    %663 = vmatpush2.msra.mxu0 0.0
    %664 = vmatprep.subr.mxu0 0.0
    %665 = vmatpush2.msra.mxu0 0.0
    %666 = vmatprep.mubr.f32.mxu0 0.0
    %667 = vmatmul.mubr.f32.gmra.mxu0 %v529
    %v668 = vpop.f32.mrf.mxu0
    %v669 = vadd.f32 0.0, %v668
    %v670 = vpop.f32.mrf.mxu0
    %671 = vdwg.mxu0
    %v672 = vld [vmem:[%s320] sm:$0xff]
    %v673 = vld [vmem:[%s320 + $0x8] sm:$0xff]
    %v674 = vld [vmem:[%s320 + $0x10] sm:$0xff]
    %s675 = scalar_lea.vmem [#allocation3], 216
    %676 = vst [vmem:[%s675] sm:$0xff] %v672
    %677 = vst [vmem:[%s675 + $0x8] sm:$0xff] %v673
    %678 = vst.msk [vmem:[%s675 + $0x10] sm:$0xff] %vm329, %v674
    %v679 = vld [vmem:[%s320] sm:$0xff]
    %v680 = vld [vmem:[%s320 + $0x8] sm:$0xff]
    %v681 = vld [vmem:[%s320 + $0x10] sm:$0xff]
    %685 = vrot.lane.b32.xlu0 %v679, 127
    %v686 = vpop.permute.xlu0 %685
    %687 = vrot.lane.b32.xlu0 %v680, 127
    %v688 = vpop.permute.xlu0 %687
    %689 = vrot.lane.b32.xlu0 %v681, 127
    %v690 = vpop.permute.xlu0 %689
    %v691 = vsel %vm343, %v686, %v688
    %v692 = vsel %vm343, %v688, %v690
    %696 = vst [vmem:[%s675 + $0x18] sm:$0xff] %v691
    %697 = vst [vmem:[%s675 + $0x20] sm:$0xff] %v692
    %698 = vst.msk [vmem:[%s675 + $0x28] sm:$0xff] %vm329, %v690
    %v699 = vld [vmem:[%s320] sm:$0xff]
    %v700 = vld [vmem:[%s320 + $0x8] sm:$0xff]
    %v701 = vld [vmem:[%s320 + $0x10] sm:$0xff]
    %705 = vrot.lane.b32.xlu0 %v699, 126
    %v706 = vpop.permute.xlu0 %705
    %707 = vrot.lane.b32.xlu0 %v700, 126
    %v708 = vpop.permute.xlu0 %707
    %709 = vrot.lane.b32.xlu0 %v701, 126
    %v710 = vpop.permute.xlu0 %709
    %v711 = vsel %vm364, %v706, %v708
    %v712 = vsel %vm364, %v708, %v710
    %716 = vst [vmem:[%s675 + $0x30] sm:$0xff] %v711
    %717 = vst [vmem:[%s675 + $0x38] sm:$0xff] %v712
    %718 = vst.msk [vmem:[%s675 + $0x40] sm:$0xff] %vm329, %v710
    %v719 = vld [vmem:[%s320] sm:$0xff]
    %v720 = vld [vmem:[%s320 + $0x8] sm:$0xff]
    %v721 = vld [vmem:[%s320 + $0x10] sm:$0xff]
    %725 = vrot.lane.b32.xlu0 %v719, 110
    %v726 = vpop.permute.xlu0 %725
    %727 = vrot.lane.b32.xlu0 %v720, 110
    %v728 = vpop.permute.xlu0 %727
    %729 = vrot.lane.b32.xlu0 %v721, 110
    %v730 = vpop.permute.xlu0 %729
    %v731 = vsel %vm385, %v726, %v728
    %v732 = vsel %vm385, %v728, %v730
    %736 = vst [vmem:[%s675 + $0x48] sm:$0xff] %v731
    %737 = vst [vmem:[%s675 + $0x50] sm:$0xff] %v732
    %738 = vst.msk [vmem:[%s675 + $0x58] sm:$0xff] %vm329, %v730
    %v739 = vld [vmem:[%s320] sm:$0xff]
    %v740 = vld [vmem:[%s320 + $0x8] sm:$0xff]
    %v741 = vld [vmem:[%s320 + $0x10] sm:$0xff]
    %745 = vrot.lane.b32.xlu0 %v739, 109
    %v746 = vpop.permute.xlu0 %745
    %747 = vrot.lane.b32.xlu0 %v740, 109
    %v748 = vpop.permute.xlu0 %747
    %749 = vrot.lane.b32.xlu0 %v741, 109
    %v750 = vpop.permute.xlu0 %749
    %v751 = vsel %vm406, %v746, %v748
    %v752 = vsel %vm406, %v748, %v750
    %756 = vst [vmem:[%s675 + $0x60] sm:$0xff] %v751
    %757 = vst [vmem:[%s675 + $0x68] sm:$0xff] %v752
    %758 = vst.msk [vmem:[%s675 + $0x70] sm:$0xff] %vm329, %v750
    %v759 = vld [vmem:[%s320] sm:$0xff]
    %v760 = vld [vmem:[%s320 + $0x8] sm:$0xff]
    %v761 = vld [vmem:[%s320 + $0x10] sm:$0xff]
    %765 = vrot.lane.b32.xlu0 %v759, 108
    %v766 = vpop.permute.xlu0 %765
    %767 = vrot.lane.b32.xlu0 %v760, 108
    %v768 = vpop.permute.xlu0 %767
    %769 = vrot.lane.b32.xlu0 %v761, 108
    %v770 = vpop.permute.xlu0 %769
    %v771 = vsel %vm427, %v766, %v768
    %v772 = vsel %vm427, %v768, %v770
    %776 = vst [vmem:[%s675 + $0x78] sm:$0xff] %v771
    %777 = vst [vmem:[%s675 + $0x80] sm:$0xff] %v772
    %778 = vst.msk [vmem:[%s675 + $0x88] sm:$0xff] %vm329, %v770
    %v779 = vld [vmem:[%s320] sm:$0xff]
    %v780 = vld [vmem:[%s320 + $0x8] sm:$0xff]
    %v781 = vld [vmem:[%s320 + $0x10] sm:$0xff]
    %785 = vrot.lane.b32.xlu0 %v779, 92
    %v786 = vpop.permute.xlu0 %785
    %787 = vrot.lane.b32.xlu0 %v780, 92
    %v788 = vpop.permute.xlu0 %787
    %789 = vrot.lane.b32.xlu0 %v781, 92
    %v790 = vpop.permute.xlu0 %789
    %v791 = vsel %vm448, %v786, %v788
    %v792 = vsel %vm448, %v788, %v790
    %796 = vst [vmem:[%s675 + $0x90] sm:$0xff] %v791
    %797 = vst [vmem:[%s675 + $0x98] sm:$0xff] %v792
    %798 = vst.msk [vmem:[%s675 + $0xa0] sm:$0xff] %vm329, %v790
    %v799 = vld [vmem:[%s320] sm:$0xff]
    %v800 = vld [vmem:[%s320 + $0x8] sm:$0xff]
    %v801 = vld [vmem:[%s320 + $0x10] sm:$0xff]
    %805 = vrot.lane.b32.xlu0 %v799, 91
    %v806 = vpop.permute.xlu0 %805
    %807 = vrot.lane.b32.xlu0 %v800, 91
    %v808 = vpop.permute.xlu0 %807
    %809 = vrot.lane.b32.xlu0 %v801, 91
    %v810 = vpop.permute.xlu0 %809
    %v811 = vsel %vm469, %v806, %v808
    %v812 = vsel %vm469, %v808, %v810
    %816 = vst [vmem:[%s675 + $0xa8] sm:$0xff] %v811
    %817 = vst [vmem:[%s675 + $0xb0] sm:$0xff] %v812
    %818 = vst.msk [vmem:[%s675 + $0xb8] sm:$0xff] %vm329, %v810
    %v819 = vld [vmem:[%s320] sm:$0xff]
    %v820 = vld [vmem:[%s320 + $0x8] sm:$0xff]
    %v821 = vld [vmem:[%s320 + $0x10] sm:$0xff]
    %825 = vrot.lane.b32.xlu0 %v819, 90
    %v826 = vpop.permute.xlu0 %825
    %827 = vrot.lane.b32.xlu0 %v820, 90
    %v828 = vpop.permute.xlu0 %827
    %829 = vrot.lane.b32.xlu0 %v821, 90
    %v830 = vpop.permute.xlu0 %829
    %v831 = vsel %vm490, %v826, %v828
    %v832 = vsel %vm490, %v828, %v830
    %836 = vst [vmem:[%s675 + $0xc0] sm:$0xff] %v831
    %837 = vst [vmem:[%s675 + $0xc8] sm:$0xff] %v832
    %838 = vst.msk [vmem:[%s675 + $0xd0] sm:$0xff] %vm329, %v830
    %v839 = vld [vmem:[%s4] sm:$0xf]
    %v840 = vld [vmem:[%s675] sm:$0xff]
    %v841 = vld [vmem:[%s675 + $0x8] sm:$0xff]
    %v842 = vld [vmem:[%s675 + $0x10] sm:$0xff]
    %v843 = vld [vmem:[%s675 + $0x18] sm:$0xff]
    %v844 = vld [vmem:[%s675 + $0x20] sm:$0xff]
    %v845 = vld [vmem:[%s675 + $0x28] sm:$0xff]
    %v846 = vld [vmem:[%s675 + $0x30] sm:$0xff]
    %v847 = vld [vmem:[%s675 + $0x38] sm:$0xff]
    %v848 = vld [vmem:[%s675 + $0x40] sm:$0xff]
    %v849 = vld [vmem:[%s675 + $0x48] sm:$0xff]
    %v850 = vld [vmem:[%s675 + $0x50] sm:$0xff]
    %v851 = vld [vmem:[%s675 + $0x58] sm:$0xff]
    %v852 = vld [vmem:[%s675 + $0x60] sm:$0xff]
    %v853 = vld [vmem:[%s675 + $0x68] sm:$0xff]
    %v854 = vld [vmem:[%s675 + $0x70] sm:$0xff]
    %v855 = vld [vmem:[%s675 + $0x78] sm:$0xff]
    %v856 = vld [vmem:[%s675 + $0x80] sm:$0xff]
    %v857 = vld [vmem:[%s675 + $0x88] sm:$0xff]
    %v858 = vld [vmem:[%s675 + $0x90] sm:$0xff]
    %v859 = vld [vmem:[%s675 + $0x98] sm:$0xff]
    %v860 = vld [vmem:[%s675 + $0xa0] sm:$0xff]
    %v861 = vld [vmem:[%s675 + $0xa8] sm:$0xff]
    %v862 = vld [vmem:[%s675 + $0xb0] sm:$0xff]
    %v863 = vld [vmem:[%s675 + $0xb8] sm:$0xff]
    %v864 = vld [vmem:[%s675 + $0xc0] sm:$0xff]
    %v865 = vld [vmem:[%s675 + $0xc8] sm:$0xff]
    %v866 = vld [vmem:[%s675 + $0xd0] sm:$0xff]
    %v868 = vsel %vm527, %v839, 0
    %870 = vmatprep.subr.mxu0 0.0
    %871 = vmatpush1.msra.mxu0 0.0
    %872 = vmatprep.subr.mxu0 0.0
    %873 = vmatpush1.msra.mxu0 0.0
    %874 = vmatprep.subr.mxu0 0.0
    %875 = vmatpush1.msra.mxu0 0.0
    %876 = vmatprep.subr.mxu0 0.0
    %877 = vmatpush1.msra.mxu0 0.0
    %878 = vmatprep.subr.mxu0 0.0
    %879 = vmatpush1.msra.mxu0 0.0
    %880 = vmatprep.subr.mxu0 0.0
    %881 = vmatpush1.msra.mxu0 0.0
    %882 = vmatprep.subr.mxu0 0.0
    %883 = vmatpush1.msra.mxu0 0.0
    %884 = vmatprep.subr.mxu0 %v865
    %885 = vmatpush1.msra.mxu0 %v864
    %886 = vmatprep.subr.mxu0 %v862
    %887 = vmatpush1.msra.mxu0 %v861
    %888 = vmatprep.subr.mxu0 %v859
    %889 = vmatpush1.msra.mxu0 %v858
    %890 = vmatprep.subr.mxu0 %v856
    %891 = vmatpush1.msra.mxu0 %v855
    %892 = vmatprep.subr.mxu0 %v853
    %893 = vmatpush1.msra.mxu0 %v852
    %894 = vmatprep.subr.mxu0 %v850
    %895 = vmatpush1.msra.mxu0 %v849
    %896 = vmatprep.subr.mxu0 %v847
    %897 = vmatpush1.msra.mxu0 %v846
    %898 = vmatprep.subr.mxu0 %v844
    %899 = vmatpush1.msra.mxu0 %v843
    %900 = vmatprep.subr.mxu0 %v841
    %901 = vmatpush1.msra.mxu0 %v840
    %902 = vmatprep.subr.mxu0 0.0
    %903 = vmatpush2.msra.mxu0 0.0
    %904 = vmatprep.subr.mxu0 0.0
    %905 = vmatpush2.msra.mxu0 0.0
    %906 = vmatprep.subr.mxu0 0.0
    %907 = vmatpush2.msra.mxu0 0.0
    %908 = vmatprep.subr.mxu0 0.0
    %909 = vmatpush2.msra.mxu0 0.0
    %910 = vmatprep.subr.mxu0 0.0
    %911 = vmatpush2.msra.mxu0 0.0
    %912 = vmatprep.subr.mxu0 0.0
    %913 = vmatpush2.msra.mxu0 0.0
    %914 = vmatprep.subr.mxu0 0.0
    %915 = vmatpush2.msra.mxu0 0.0
    %916 = vmatprep.subr.mxu0 0.0
    %917 = vmatpush2.msra.mxu0 0.0
    %918 = vmatprep.subr.mxu0 0.0
    %919 = vmatpush2.msra.mxu0 0.0
    %920 = vmatprep.subr.mxu0 0.0
    %921 = vmatpush2.msra.mxu0 0.0
    %922 = vmatprep.subr.mxu0 0.0
    %923 = vmatpush2.msra.mxu0 0.0
    %924 = vmatprep.subr.mxu0 0.0
    %925 = vmatpush2.msra.mxu0 0.0
    %926 = vmatprep.subr.mxu0 0.0
    %927 = vmatpush2.msra.mxu0 0.0
    %928 = vmatprep.subr.mxu0 0.0
    %929 = vmatpush2.msra.mxu0 0.0
    %930 = vmatprep.subr.mxu0 0.0
    %931 = vmatpush2.msra.mxu0 0.0
    %932 = vmatprep.subr.mxu0 0.0
    %933 = vmatpush2.msra.mxu0 0.0
    %934 = vmatprep.mubr.f32.mxu0 0.0
    %935 = vmatmul.mubr.f32.gmra.mxu0 %v868
    %v936 = vpop.f32.mrf.mxu0
    %v937 = vadd.f32 0.0, %v936
    %v938 = vpop.f32.mrf.mxu0
    %v939 = vadd.f32 0.0, %v938
    %940 = vdwg.mxu0
    %941 = vmatprep.subr.mxu0 0.0
    %942 = vmatpush1.msra.mxu0 0.0
    %943 = vmatprep.subr.mxu0 0.0
    %944 = vmatpush1.msra.mxu0 0.0
    %945 = vmatprep.subr.mxu0 0.0
    %946 = vmatpush1.msra.mxu0 0.0
    %947 = vmatprep.subr.mxu0 0.0
    %948 = vmatpush1.msra.mxu0 0.0
    %949 = vmatprep.subr.mxu0 0.0
    %950 = vmatpush1.msra.mxu0 0.0
    %951 = vmatprep.subr.mxu0 0.0
    %952 = vmatpush1.msra.mxu0 0.0
    %953 = vmatprep.subr.mxu0 0.0
    %954 = vmatpush1.msra.mxu0 0.0
    %955 = vmatprep.subr.mxu0 0.0
    %956 = vmatpush1.msra.mxu0 %v866
    %957 = vmatprep.subr.mxu0 0.0
    %958 = vmatpush1.msra.mxu0 %v863
    %959 = vmatprep.subr.mxu0 0.0
    %960 = vmatpush1.msra.mxu0 %v860
    %961 = vmatprep.subr.mxu0 0.0
    %962 = vmatpush1.msra.mxu0 %v857
    %963 = vmatprep.subr.mxu0 0.0
    %964 = vmatpush1.msra.mxu0 %v854
    %965 = vmatprep.subr.mxu0 0.0
    %966 = vmatpush1.msra.mxu0 %v851
    %967 = vmatprep.subr.mxu0 0.0
    %968 = vmatpush1.msra.mxu0 %v848
    %969 = vmatprep.subr.mxu0 0.0
    %970 = vmatpush1.msra.mxu0 %v845
    %971 = vmatprep.subr.mxu0 0.0
    %972 = vmatpush1.msra.mxu0 %v842
    %973 = vmatprep.subr.mxu0 0.0
    %974 = vmatpush2.msra.mxu0 0.0
    %975 = vmatprep.subr.mxu0 0.0
    %976 = vmatpush2.msra.mxu0 0.0
    %977 = vmatprep.subr.mxu0 0.0
    %978 = vmatpush2.msra.mxu0 0.0
    %979 = vmatprep.subr.mxu0 0.0
    %980 = vmatpush2.msra.mxu0 0.0
    %981 = vmatprep.subr.mxu0 0.0
    %982 = vmatpush2.msra.mxu0 0.0
    %983 = vmatprep.subr.mxu0 0.0
    %984 = vmatpush2.msra.mxu0 0.0
    %985 = vmatprep.subr.mxu0 0.0
    %986 = vmatpush2.msra.mxu0 0.0
    %987 = vmatprep.subr.mxu0 0.0
    %988 = vmatpush2.msra.mxu0 0.0
    %989 = vmatprep.subr.mxu0 0.0
    %990 = vmatpush2.msra.mxu0 0.0
    %991 = vmatprep.subr.mxu0 0.0
    %992 = vmatpush2.msra.mxu0 0.0
    %993 = vmatprep.subr.mxu0 0.0
    %994 = vmatpush2.msra.mxu0 0.0
    %995 = vmatprep.subr.mxu0 0.0
    %996 = vmatpush2.msra.mxu0 0.0
    %997 = vmatprep.subr.mxu0 0.0
    %998 = vmatpush2.msra.mxu0 0.0
    %999 = vmatprep.subr.mxu0 0.0
    %1000 = vmatpush2.msra.mxu0 0.0
    %1001 = vmatprep.subr.mxu0 0.0
    %1002 = vmatpush2.msra.mxu0 0.0
    %1003 = vmatprep.subr.mxu0 0.0
    %1004 = vmatpush2.msra.mxu0 0.0
    %1005 = vmatprep.mubr.f32.mxu0 0.0
    %1006 = vmatmul.mubr.f32.gmra.mxu0 %v868
    %v1007 = vpop.f32.mrf.mxu0
    %v1008 = vadd.f32 0.0, %v1007
    %v1009 = vpop.f32.mrf.mxu0
    %1010 = vdwg.mxu0
    %v1012 = vlaneseq
    %v1013 = vshrl.u32 %v1012, 7
    %v1014 = vsub.s32 0, %v1013
    %v1015 = vrot.slane %v64, %v1014
    %v1016 = vlaneseq
    %v1017 = vshrl.u32 %v1016, 7
    %v1018 = vsub.s32 1, %v1017
    %v1019 = vrot.slane %v64, %v1018
    %v1020 = vlaneseq
    %v1021 = vshrl.u32 %v1020, 7
    %v1022 = vsub.s32 2, %v1021
    %v1023 = vrot.slane %v64, %v1022
    %v1027 = vmul.f32 %v598, %v1015
    %v1028 = vmul.f32 %v600, %v1019
    %v1029 = vmul.f32 %v669, %v1023
    %vm1030 = vcmask 1043456
    %v1031 = vsel %vm1030, %v1027, 0.0
    %v1032 = vsel %vm1030, %v1028, 0.0
    %v1033 = vadd.f32 %v1031, %v1032
    %vm1034 = vcmask 551936
    %v1035 = vsel %vm1034, %v1029, 0.0
    %v1036 = vadd.f32 %v1033, %v1035
    %1037 = vadd.xlane.f32.xlu0 %v1036
    %v1038 = vpop.xlane.xlu0 %1037
    %v1039 = vadd.f32 %v1038, 0.0
    %v1040 = vmul.f32 %v937, %v1015
    %v1041 = vmul.f32 %v939, %v1019
    %v1042 = vmul.f32 %v1008, %v1023
    %v1043 = vsel %vm1030, %v1040, 0.0
    %v1044 = vsel %vm1030, %v1041, 0.0
    %v1045 = vadd.f32 %v1043, %v1044
    %v1046 = vsel %vm1034, %v1042, 0.0
    %v1047 = vadd.f32 %v1045, %v1046
    %1048 = vadd.xlane.f32.xlu0 %v1047
    %v1049 = vpop.xlane.xlu0 %1048
    %v1050 = vadd.f32 %v1039, %v1049
    %v1051 = vmul.f32 %v598, %v598
    %v1052 = vmul.f32 %v600, %v600
    %v1053 = vmul.f32 %v669, %v669
    %v1054 = vmul.f32 %v1051, %v1015
    %v1055 = vmul.f32 %v1052, %v1019
    %v1056 = vmul.f32 %v1053, %v1023
    %v1057 = vsel %vm1030, %v1054, 0.0
    %v1058 = vsel %vm1030, %v1055, 0.0
    %v1059 = vadd.f32 %v1057, %v1058
    %v1060 = vsel %vm1034, %v1056, 0.0
    %v1061 = vadd.f32 %v1059, %v1060
    %1062 = vadd.xlane.f32.xlu0 %v1061
    %v1063 = vpop.xlane.xlu0 %1062
    %v1064 = vadd.f32 %v1063, 0.0
    %v1065 = vmul.f32 %v937, %v937
    %v1066 = vmul.f32 %v939, %v939
    %v1067 = vmul.f32 %v1008, %v1008
    %v1068 = vmul.f32 %v1065, %v1015
    %v1069 = vmul.f32 %v1066, %v1019
    %v1070 = vmul.f32 %v1067, %v1023
    %v1071 = vsel %vm1030, %v1068, 0.0
    %v1072 = vsel %vm1030, %v1069, 0.0
    %v1073 = vadd.f32 %v1071, %v1072
    %v1074 = vsel %vm1034, %v1070, 0.0
    %v1075 = vadd.f32 %v1073, %v1074
    %1076 = vadd.xlane.f32.xlu0 %v1075
    %v1077 = vpop.xlane.xlu0 %1076
    %v1078 = vadd.f32 %v1064, %v1077
    %v1079 = vmul.f32 %v1050, 0.001953125
    %v1080 = vmul.f32 %v1078, 0.001953125
    %v1081 = vmul.f32 %v1079, %v1079
    %v1082 = vsub.f32 %v1080, %v1081
    %v1083 = vadd.f32 %v1082, 1e-05
    %v1084 = vrsqrt.pop %v1083
    %v1085 = vld [vmem:[%s5] sm:$0xf]
    %v1086 = vmul.f32 %v1084, %v1085
    %v1087 = vld [vmem:[%s6] sm:$0xf]
    %v1088 = vmul.f32 %v1079, %v1086
    %v1089 = vsub.f32 %v1087, %v1088
    %1091 = vset.pattern.permute.xlu0 0
    %1092 = vperm.xlu0 %1091, %v1086
    %v1093 = vpop.permute.xlu0 %1092
    %v1095 = vmul.f32 %v598, %v1093
    %v1096 = vmul.f32 %v600, %v1093
    %v1097 = vmul.f32 %v669, %v1093
    %1099 = vset.pattern.permute.xlu0 0
    %1100 = vperm.xlu0 %1099, %v1089
    %v1101 = vpop.permute.xlu0 %1100
    %v1103 = vadd.f32 %v1095, %v1101
    %v1104 = vadd.f32 %v1096, %v1101
    %v1105 = vadd.f32 %v1097, %v1101
    %v1106 = vmax.f32 %v1103, 0.0
    %v1107 = vmax.f32 %v1104, 0.0
    %v1108 = vmax.f32 %v1105, 0.0
    %v1109 = vmul.f32 %v1106, %v1015
    %v1110 = vmul.f32 %v1107, %v1019
    %v1111 = vmul.f32 %v1108, %v1023
    %v1112 = vmul.f32 %v937, %v1093
    %v1113 = vmul.f32 %v939, %v1093
    %v1114 = vmul.f32 %v1008, %v1093
    %v1115 = vadd.f32 %v1112, %v1101
    %v1116 = vadd.f32 %v1113, %v1101
    %v1117 = vadd.f32 %v1114, %v1101
    %v1118 = vmax.f32 %v1115, 0.0
    %v1119 = vmax.f32 %v1116, 0.0
    %v1120 = vmax.f32 %v1117, 0.0
    %v1121 = vmul.f32 %v1118, %v1015
    %v1122 = vmul.f32 %v1119, %v1019
    %v1123 = vmul.f32 %v1120, %v1023
    %v1127 = vcombine.low %v1109, %v1110
    %1128 = vrot.lane.b32.xlu0 %v1127, 19
    %v1129 = vpop.permute.xlu0 %1128
    %1130 = vrot.lane.b32.xlu0 %v1111, 19
    %v1131 = vpop.permute.xlu0 %1130
    %v1132 = vrot.slane %v1129, 4
    %v1133 = vsel %vm65, %v1132, %v1129
    %v1134 = vsel %vm65, %v1132, %v1131
    %vm1137 = vcmask 1047556
    %vm1138 = vmor %vm1137, %vm279
    %1139 = vst.msk [vmem:[#allocation4] sm:$0xff] %vm1138, %v1133
    %1140 = vst.msk [vmem:[#allocation4 + $0x8] sm:$0xf] %vm282, %v1134
    %v1144 = vcombine.low %v1121, %v1122
    %1145 = vrot.lane.b32.xlu0 %v1144, 19
    %v1146 = vpop.permute.xlu0 %1145
    %1147 = vrot.lane.b32.xlu0 %v1123, 19
    %v1148 = vpop.permute.xlu0 %1147
    %v1149 = vrot.slane %v1146, 4
    %v1150 = vsel %vm65, %v1149, %v1146
    %v1151 = vsel %vm65, %v1149, %v1148
    %s1154 = scalar_lea.vmem [#allocation4], 12
    %1155 = vst.msk [vmem:[%s1154] sm:$0xff] %vm1138, %v1150
    %1156 = vst.msk [vmem:[%s1154 + $0x8] sm:$0xf] %vm282, %v1151
    %v1157 = vld [vmem:[#allocation4] sm:$0xff]
    %v1158 = vld [vmem:[#allocation4 + $0x8] sm:$0xf]
    %v1160 = vcombine.high %v1157, %v1157
    %1162 = vst [vmem:[#allocation5] sm:$0xf] %v1157
    %1163 = vst [vmem:[#allocation5 + $0x8] sm:$0xf] %v1160
    %1164 = vst.msk [vmem:[#allocation5 + $0x10] sm:$0xf] %vm1034, %v1158
    %v1165 = vld [vmem:[#allocation4] sm:$0xff]
    %v1166 = vld [vmem:[#allocation4 + $0x8] sm:$0xf]
    %v1169 = vcombine.low %v1165, %v1165
    %v1170 = vcombine.low %v1166, %v1166
    %1171 = vrot.lane.b32.xlu0 %v1169, 127
    %v1172 = vpop.permute.xlu0 %1171
    %1173 = vrot.lane.b32.xlu0 %v1165, 127
    %v1174 = vpop.permute.xlu0 %1173
    %1175 = vrot.lane.b32.xlu0 %v1170, 127
    %v1176 = vpop.permute.xlu0 %1175
    %v1177 = vsel %vm343, %v1172, %v1174
    %v1178 = vsel %vm343, %v1174, %v1176
    %1182 = vst [vmem:[#allocation5] sm:$0xf0] %v1177
    %1183 = vst [vmem:[#allocation5 + $0x8] sm:$0xf0] %v1178
    %vm1184 = vcmask 556036
    %1185 = vst.msk [vmem:[#allocation5 + $0x10] sm:$0xf0] %vm1184, %v1176
    %v1186 = vld [vmem:[#allocation4] sm:$0xff]
    %v1187 = vld [vmem:[#allocation4 + $0x8] sm:$0xf]
    %v1190 = vcombine.high %v1186, %v1186
    %1191 = vrot.lane.b32.xlu0 %v1186, 126
    %v1192 = vpop.permute.xlu0 %1191
    %1193 = vrot.lane.b32.xlu0 %v1190, 126
    %v1194 = vpop.permute.xlu0 %1193
    %1195 = vrot.lane.b32.xlu0 %v1187, 126
    %v1196 = vpop.permute.xlu0 %1195
    %v1197 = vsel %vm364, %v1192, %v1194
    %v1198 = vsel %vm364, %v1194, %v1196
    %1202 = vst [vmem:[#allocation5 + $0x18] sm:$0xf] %v1197
    %1203 = vst [vmem:[#allocation5 + $0x20] sm:$0xf] %v1198
    %1204 = vst.msk [vmem:[#allocation5 + $0x28] sm:$0xf] %vm1034, %v1196
    %v1205 = vld [vmem:[#allocation4] sm:$0xff]
    %v1206 = vld [vmem:[#allocation4 + $0x8] sm:$0xf]
    %v1209 = vcombine.low %v1205, %v1205
    %v1210 = vcombine.low %v1206, %v1206
    %1211 = vrot.lane.b32.xlu0 %v1209, 110
    %v1212 = vpop.permute.xlu0 %1211
    %1213 = vrot.lane.b32.xlu0 %v1205, 110
    %v1214 = vpop.permute.xlu0 %1213
    %1215 = vrot.lane.b32.xlu0 %v1210, 110
    %v1216 = vpop.permute.xlu0 %1215
    %v1217 = vsel %vm385, %v1212, %v1214
    %v1218 = vsel %vm385, %v1214, %v1216
    %1222 = vst [vmem:[#allocation5 + $0x18] sm:$0xf0] %v1217
    %1223 = vst [vmem:[#allocation5 + $0x20] sm:$0xf0] %v1218
    %1224 = vst.msk [vmem:[#allocation5 + $0x28] sm:$0xf0] %vm1184, %v1216
    %v1225 = vld [vmem:[#allocation4] sm:$0xff]
    %v1226 = vld [vmem:[#allocation4 + $0x8] sm:$0xf]
    %v1229 = vcombine.high %v1225, %v1225
    %1230 = vrot.lane.b32.xlu0 %v1225, 109
    %v1231 = vpop.permute.xlu0 %1230
    %1232 = vrot.lane.b32.xlu0 %v1229, 109
    %v1233 = vpop.permute.xlu0 %1232
    %1234 = vrot.lane.b32.xlu0 %v1226, 109
    %v1235 = vpop.permute.xlu0 %1234
    %v1236 = vsel %vm406, %v1231, %v1233
    %v1237 = vsel %vm406, %v1233, %v1235
    %1241 = vst [vmem:[#allocation5 + $0x30] sm:$0xf] %v1236
    %1242 = vst [vmem:[#allocation5 + $0x38] sm:$0xf] %v1237
    %1243 = vst.msk [vmem:[#allocation5 + $0x40] sm:$0xf] %vm1034, %v1235
    %v1244 = vld [vmem:[#allocation4] sm:$0xff]
    %v1245 = vld [vmem:[#allocation4 + $0x8] sm:$0xf]
    %v1248 = vcombine.low %v1244, %v1244
    %v1249 = vcombine.low %v1245, %v1245
    %1250 = vrot.lane.b32.xlu0 %v1248, 108
    %v1251 = vpop.permute.xlu0 %1250
    %1252 = vrot.lane.b32.xlu0 %v1244, 108
    %v1253 = vpop.permute.xlu0 %1252
    %1254 = vrot.lane.b32.xlu0 %v1249, 108
    %v1255 = vpop.permute.xlu0 %1254
    %v1256 = vsel %vm427, %v1251, %v1253
    %v1257 = vsel %vm427, %v1253, %v1255
    %1261 = vst [vmem:[#allocation5 + $0x30] sm:$0xf0] %v1256
    %1262 = vst [vmem:[#allocation5 + $0x38] sm:$0xf0] %v1257
    %1263 = vst.msk [vmem:[#allocation5 + $0x40] sm:$0xf0] %vm1184, %v1255
    %v1264 = vld [vmem:[#allocation4] sm:$0xff]
    %v1265 = vld [vmem:[#allocation4 + $0x8] sm:$0xf]
    %v1268 = vcombine.high %v1264, %v1264
    %1269 = vrot.lane.b32.xlu0 %v1264, 92
    %v1270 = vpop.permute.xlu0 %1269
    %1271 = vrot.lane.b32.xlu0 %v1268, 92
    %v1272 = vpop.permute.xlu0 %1271
    %1273 = vrot.lane.b32.xlu0 %v1265, 92
    %v1274 = vpop.permute.xlu0 %1273
    %v1275 = vsel %vm448, %v1270, %v1272
    %v1276 = vsel %vm448, %v1272, %v1274
    %1280 = vst [vmem:[#allocation5 + $0x48] sm:$0xf] %v1275
    %1281 = vst [vmem:[#allocation5 + $0x50] sm:$0xf] %v1276
    %1282 = vst.msk [vmem:[#allocation5 + $0x58] sm:$0xf] %vm1034, %v1274
    %v1283 = vld [vmem:[#allocation4] sm:$0xff]
    %v1284 = vld [vmem:[#allocation4 + $0x8] sm:$0xf]
    %v1287 = vcombine.low %v1283, %v1283
    %v1288 = vcombine.low %v1284, %v1284
    %1289 = vrot.lane.b32.xlu0 %v1287, 91
    %v1290 = vpop.permute.xlu0 %1289
    %1291 = vrot.lane.b32.xlu0 %v1283, 91
    %v1292 = vpop.permute.xlu0 %1291
    %1293 = vrot.lane.b32.xlu0 %v1288, 91
    %v1294 = vpop.permute.xlu0 %1293
    %v1295 = vsel %vm469, %v1290, %v1292
    %v1296 = vsel %vm469, %v1292, %v1294
    %1300 = vst [vmem:[#allocation5 + $0x48] sm:$0xf0] %v1295
    %1301 = vst [vmem:[#allocation5 + $0x50] sm:$0xf0] %v1296
    %1302 = vst.msk [vmem:[#allocation5 + $0x58] sm:$0xf0] %vm1184, %v1294
    %v1303 = vld [vmem:[#allocation4] sm:$0xff]
    %v1304 = vld [vmem:[#allocation4 + $0x8] sm:$0xf]
    %v1307 = vcombine.high %v1303, %v1303
    %1308 = vrot.lane.b32.xlu0 %v1303, 90
    %v1309 = vpop.permute.xlu0 %1308
    %1310 = vrot.lane.b32.xlu0 %v1307, 90
    %v1311 = vpop.permute.xlu0 %1310
    %1312 = vrot.lane.b32.xlu0 %v1304, 90
    %v1313 = vpop.permute.xlu0 %1312
    %v1314 = vsel %vm490, %v1309, %v1311
    %v1315 = vsel %vm490, %v1311, %v1313
    %1319 = vst [vmem:[#allocation5 + $0x60] sm:$0xf] %v1314
    %1320 = vst [vmem:[#allocation5 + $0x68] sm:$0xf] %v1315
    %1321 = vst.msk [vmem:[#allocation5 + $0x70] sm:$0xf] %vm1034, %v1313
    %v1322 = vld [vmem:[%s7] sm:$0xf]
    %v1323 = vld [vmem:[#allocation5] sm:$0xff]
    %v1324 = vld [vmem:[#allocation5 + $0x8] sm:$0xff]
    %v1325 = vld [vmem:[#allocation5 + $0x10] sm:$0xff]
    %v1326 = vld [vmem:[#allocation5 + $0x18] sm:$0xff]
    %v1327 = vld [vmem:[#allocation5 + $0x20] sm:$0xff]
    %v1328 = vld [vmem:[#allocation5 + $0x28] sm:$0xff]
    %v1329 = vld [vmem:[#allocation5 + $0x30] sm:$0xff]
    %v1330 = vld [vmem:[#allocation5 + $0x38] sm:$0xff]
    %v1331 = vld [vmem:[#allocation5 + $0x40] sm:$0xff]
    %v1332 = vld [vmem:[#allocation5 + $0x48] sm:$0xff]
    %v1333 = vld [vmem:[#allocation5 + $0x50] sm:$0xff]
    %v1334 = vld [vmem:[#allocation5 + $0x58] sm:$0xff]
    %v1335 = vld [vmem:[#allocation5 + $0x60] sm:$0xf]
    %v1336 = vld [vmem:[#allocation5 + $0x68] sm:$0xf]
    %v1337 = vld [vmem:[#allocation5 + $0x70] sm:$0xf]
    %vm1338 = vcmask 293888
    %v1340 = vsel %vm1338, %v1322, 0
    %v1343 = vsel %vm1030, %v1335, 0
    %v1346 = vsel %vm1030, %v1336, 0
    %v1349 = vsel %vm1030, %v1337, 0
    %1351 = vmatprep.subr.mxu0 0.0
    %1352 = vmatpush1.msra.mxu0 0.0
    %1353 = vmatprep.subr.mxu0 0.0
    %1354 = vmatpush1.msra.mxu0 0.0
    %1355 = vmatprep.subr.mxu0 0.0
    %1356 = vmatpush1.msra.mxu0 0.0
    %1357 = vmatprep.subr.mxu0 0.0
    %1358 = vmatpush1.msra.mxu0 0.0
    %1359 = vmatprep.subr.mxu0 0.0
    %1360 = vmatpush1.msra.mxu0 0.0
    %1361 = vmatprep.subr.mxu0 0.0
    %1362 = vmatpush1.msra.mxu0 0.0
    %1363 = vmatprep.subr.mxu0 0.0
    %1364 = vmatpush1.msra.mxu0 0.0
    %1365 = vmatprep.subr.mxu0 0.0
    %1366 = vmatpush1.msra.mxu0 0.0
    %1367 = vmatprep.subr.mxu0 0.0
    %1368 = vmatpush1.msra.mxu0 0.0
    %1369 = vmatprep.subr.mxu0 0.0
    %1370 = vmatpush1.msra.mxu0 0.0
    %1371 = vmatprep.subr.mxu0 0.0
    %1372 = vmatpush1.msra.mxu0 0.0
    %1373 = vmatprep.subr.mxu0 %v1346
    %1374 = vmatpush1.msra.mxu0 %v1343
    %1375 = vmatprep.subr.mxu0 %v1333
    %1376 = vmatpush1.msra.mxu0 %v1332
    %1377 = vmatprep.subr.mxu0 %v1330
    %1378 = vmatpush1.msra.mxu0 %v1329
    %1379 = vmatprep.subr.mxu0 %v1327
    %1380 = vmatpush1.msra.mxu0 %v1326
    %1381 = vmatprep.subr.mxu0 %v1324
    %1382 = vmatpush1.msra.mxu0 %v1323
    %1383 = vmatprep.subr.mxu0 0.0
    %1384 = vmatpush2.msra.mxu0 0.0
    %1385 = vmatprep.subr.mxu0 0.0
    %1386 = vmatpush2.msra.mxu0 0.0
    %1387 = vmatprep.subr.mxu0 0.0
    %1388 = vmatpush2.msra.mxu0 0.0
    %1389 = vmatprep.subr.mxu0 0.0
    %1390 = vmatpush2.msra.mxu0 0.0
    %1391 = vmatprep.subr.mxu0 0.0
    %1392 = vmatpush2.msra.mxu0 0.0
    %1393 = vmatprep.subr.mxu0 0.0
    %1394 = vmatpush2.msra.mxu0 0.0
    %1395 = vmatprep.subr.mxu0 0.0
    %1396 = vmatpush2.msra.mxu0 0.0
    %1397 = vmatprep.subr.mxu0 0.0
    %1398 = vmatpush2.msra.mxu0 0.0
    %1399 = vmatprep.subr.mxu0 0.0
    %1400 = vmatpush2.msra.mxu0 0.0
    %1401 = vmatprep.subr.mxu0 0.0
    %1402 = vmatpush2.msra.mxu0 0.0
    %1403 = vmatprep.subr.mxu0 0.0
    %1404 = vmatpush2.msra.mxu0 0.0
    %1405 = vmatprep.subr.mxu0 0.0
    %1406 = vmatpush2.msra.mxu0 0.0
    %1407 = vmatprep.subr.mxu0 0.0
    %1408 = vmatpush2.msra.mxu0 0.0
    %1409 = vmatprep.subr.mxu0 0.0
    %1410 = vmatpush2.msra.mxu0 0.0
    %1411 = vmatprep.subr.mxu0 0.0
    %1412 = vmatpush2.msra.mxu0 0.0
    %1413 = vmatprep.subr.mxu0 0.0
    %1414 = vmatpush2.msra.mxu0 0.0
    %1415 = vmatprep.mubr.f32.mxu0 0.0
    %1416 = vmatmul.mubr.f32.gmra.mxu0 %v1340
    %v1417 = vpop.f32.mrf.mxu0
    %v1418 = vadd.f32 0.0, %v1417
    %v1419 = vpop.f32.mrf.mxu0
    %v1420 = vadd.f32 0.0, %v1419
    %1421 = vdwg.mxu0
    %1422 = vmatprep.subr.mxu0 0.0
    %1423 = vmatpush1.msra.mxu0 0.0
    %1424 = vmatprep.subr.mxu0 0.0
    %1425 = vmatpush1.msra.mxu0 0.0
    %1426 = vmatprep.subr.mxu0 0.0
    %1427 = vmatpush1.msra.mxu0 0.0
    %1428 = vmatprep.subr.mxu0 0.0
    %1429 = vmatpush1.msra.mxu0 0.0
    %1430 = vmatprep.subr.mxu0 0.0
    %1431 = vmatpush1.msra.mxu0 0.0
    %1432 = vmatprep.subr.mxu0 0.0
    %1433 = vmatpush1.msra.mxu0 0.0
    %1434 = vmatprep.subr.mxu0 0.0
    %1435 = vmatpush1.msra.mxu0 0.0
    %1436 = vmatprep.subr.mxu0 0.0
    %1437 = vmatpush1.msra.mxu0 0.0
    %1438 = vmatprep.subr.mxu0 0.0
    %1439 = vmatpush1.msra.mxu0 0.0
    %1440 = vmatprep.subr.mxu0 0.0
    %1441 = vmatpush1.msra.mxu0 0.0
    %1442 = vmatprep.subr.mxu0 0.0
    %1443 = vmatpush1.msra.mxu0 0.0
    %1444 = vmatprep.subr.mxu0 0.0
    %1445 = vmatpush1.msra.mxu0 %v1349
    %1446 = vmatprep.subr.mxu0 0.0
    %1447 = vmatpush1.msra.mxu0 %v1334
    %1448 = vmatprep.subr.mxu0 0.0
    %1449 = vmatpush1.msra.mxu0 %v1331
    %1450 = vmatprep.subr.mxu0 0.0
    %1451 = vmatpush1.msra.mxu0 %v1328
    %1452 = vmatprep.subr.mxu0 0.0
    %1453 = vmatpush1.msra.mxu0 %v1325
    %1454 = vmatprep.subr.mxu0 0.0
    %1455 = vmatpush2.msra.mxu0 0.0
    %1456 = vmatprep.subr.mxu0 0.0
    %1457 = vmatpush2.msra.mxu0 0.0
    %1458 = vmatprep.subr.mxu0 0.0
    %1459 = vmatpush2.msra.mxu0 0.0
    %1460 = vmatprep.subr.mxu0 0.0
    %1461 = vmatpush2.msra.mxu0 0.0
    %1462 = vmatprep.subr.mxu0 0.0
    %1463 = vmatpush2.msra.mxu0 0.0
    %1464 = vmatprep.subr.mxu0 0.0
    %1465 = vmatpush2.msra.mxu0 0.0
    %1466 = vmatprep.subr.mxu0 0.0
    %1467 = vmatpush2.msra.mxu0 0.0
    %1468 = vmatprep.subr.mxu0 0.0
    %1469 = vmatpush2.msra.mxu0 0.0
    %1470 = vmatprep.subr.mxu0 0.0
    %1471 = vmatpush2.msra.mxu0 0.0
    %1472 = vmatprep.subr.mxu0 0.0
    %1473 = vmatpush2.msra.mxu0 0.0
    %1474 = vmatprep.subr.mxu0 0.0
    %1475 = vmatpush2.msra.mxu0 0.0
    %1476 = vmatprep.subr.mxu0 0.0
    %1477 = vmatpush2.msra.mxu0 0.0
    %1478 = vmatprep.subr.mxu0 0.0
    %1479 = vmatpush2.msra.mxu0 0.0
    %1480 = vmatprep.subr.mxu0 0.0
    %1481 = vmatpush2.msra.mxu0 0.0
    %1482 = vmatprep.subr.mxu0 0.0
    %1483 = vmatpush2.msra.mxu0 0.0
    %1484 = vmatprep.subr.mxu0 0.0
    %1485 = vmatpush2.msra.mxu0 0.0
    %1486 = vmatprep.mubr.f32.mxu0 0.0
    %1487 = vmatmul.mubr.f32.gmra.mxu0 %v1340
    %v1488 = vpop.f32.mrf.mxu0
    %v1489 = vadd.f32 0.0, %v1488
    %v1490 = vpop.f32.mrf.mxu0
    %1491 = vdwg.mxu0
    %v1492 = vld [vmem:[%s1154] sm:$0xff]
    %v1493 = vld [vmem:[%s1154 + $0x8] sm:$0xf]
    %v1495 = vcombine.high %v1492, %v1492
    %s1497 = scalar_lea.vmem [#allocation5], 120
    %1498 = vst [vmem:[%s1497] sm:$0xf] %v1492
    %1499 = vst [vmem:[%s1497 + $0x8] sm:$0xf] %v1495
    %1500 = vst.msk [vmem:[%s1497 + $0x10] sm:$0xf] %vm1034, %v1493
    %v1501 = vld [vmem:[%s1154] sm:$0xff]
    %v1502 = vld [vmem:[%s1154 + $0x8] sm:$0xf]
    %v1505 = vcombine.low %v1501, %v1501
    %v1506 = vcombine.low %v1502, %v1502
    %1507 = vrot.lane.b32.xlu0 %v1505, 127
    %v1508 = vpop.permute.xlu0 %1507
    %1509 = vrot.lane.b32.xlu0 %v1501, 127
    %v1510 = vpop.permute.xlu0 %1509
    %1511 = vrot.lane.b32.xlu0 %v1506, 127
    %v1512 = vpop.permute.xlu0 %1511
    %v1513 = vsel %vm343, %v1508, %v1510
    %v1514 = vsel %vm343, %v1510, %v1512
    %1518 = vst [vmem:[%s1497] sm:$0xf0] %v1513
    %1519 = vst [vmem:[%s1497 + $0x8] sm:$0xf0] %v1514
    %1520 = vst.msk [vmem:[%s1497 + $0x10] sm:$0xf0] %vm1184, %v1512
    %v1521 = vld [vmem:[%s1154] sm:$0xff]
    %v1522 = vld [vmem:[%s1154 + $0x8] sm:$0xf]
    %v1525 = vcombine.high %v1521, %v1521
    %1526 = vrot.lane.b32.xlu0 %v1521, 126
    %v1527 = vpop.permute.xlu0 %1526
    %1528 = vrot.lane.b32.xlu0 %v1525, 126
    %v1529 = vpop.permute.xlu0 %1528
    %1530 = vrot.lane.b32.xlu0 %v1522, 126
    %v1531 = vpop.permute.xlu0 %1530
    %v1532 = vsel %vm364, %v1527, %v1529
    %v1533 = vsel %vm364, %v1529, %v1531
    %1537 = vst [vmem:[%s1497 + $0x18] sm:$0xf] %v1532
    %1538 = vst [vmem:[%s1497 + $0x20] sm:$0xf] %v1533
    %1539 = vst.msk [vmem:[%s1497 + $0x28] sm:$0xf] %vm1034, %v1531
    %v1540 = vld [vmem:[%s1154] sm:$0xff]
    %v1541 = vld [vmem:[%s1154 + $0x8] sm:$0xf]
    %v1544 = vcombine.low %v1540, %v1540
    %v1545 = vcombine.low %v1541, %v1541
    %1546 = vrot.lane.b32.xlu0 %v1544, 110
    %v1547 = vpop.permute.xlu0 %1546
    %1548 = vrot.lane.b32.xlu0 %v1540, 110
    %v1549 = vpop.permute.xlu0 %1548
    %1550 = vrot.lane.b32.xlu0 %v1545, 110
    %v1551 = vpop.permute.xlu0 %1550
    %v1552 = vsel %vm385, %v1547, %v1549
    %v1553 = vsel %vm385, %v1549, %v1551
    %1557 = vst [vmem:[%s1497 + $0x18] sm:$0xf0] %v1552
    %1558 = vst [vmem:[%s1497 + $0x20] sm:$0xf0] %v1553
    %1559 = vst.msk [vmem:[%s1497 + $0x28] sm:$0xf0] %vm1184, %v1551
    %v1560 = vld [vmem:[%s1154] sm:$0xff]
    %v1561 = vld [vmem:[%s1154 + $0x8] sm:$0xf]
    %v1564 = vcombine.high %v1560, %v1560
    %1565 = vrot.lane.b32.xlu0 %v1560, 109
    %v1566 = vpop.permute.xlu0 %1565
    %1567 = vrot.lane.b32.xlu0 %v1564, 109
    %v1568 = vpop.permute.xlu0 %1567
    %1569 = vrot.lane.b32.xlu0 %v1561, 109
    %v1570 = vpop.permute.xlu0 %1569
    %v1571 = vsel %vm406, %v1566, %v1568
    %v1572 = vsel %vm406, %v1568, %v1570
    %1576 = vst [vmem:[%s1497 + $0x30] sm:$0xf] %v1571
    %1577 = vst [vmem:[%s1497 + $0x38] sm:$0xf] %v1572
    %1578 = vst.msk [vmem:[%s1497 + $0x40] sm:$0xf] %vm1034, %v1570
    %v1579 = vld [vmem:[%s1154] sm:$0xff]
    %v1580 = vld [vmem:[%s1154 + $0x8] sm:$0xf]
    %v1583 = vcombine.low %v1579, %v1579
    %v1584 = vcombine.low %v1580, %v1580
    %1585 = vrot.lane.b32.xlu0 %v1583, 108
    %v1586 = vpop.permute.xlu0 %1585
    %1587 = vrot.lane.b32.xlu0 %v1579, 108
    %v1588 = vpop.permute.xlu0 %1587
    %1589 = vrot.lane.b32.xlu0 %v1584, 108
    %v1590 = vpop.permute.xlu0 %1589
    %v1591 = vsel %vm427, %v1586, %v1588
    %v1592 = vsel %vm427, %v1588, %v1590
    %1596 = vst [vmem:[%s1497 + $0x30] sm:$0xf0] %v1591
    %1597 = vst [vmem:[%s1497 + $0x38] sm:$0xf0] %v1592
    %1598 = vst.msk [vmem:[%s1497 + $0x40] sm:$0xf0] %vm1184, %v1590
    %v1599 = vld [vmem:[%s1154] sm:$0xff]
    %v1600 = vld [vmem:[%s1154 + $0x8] sm:$0xf]
    %v1603 = vcombine.high %v1599, %v1599
    %1604 = vrot.lane.b32.xlu0 %v1599, 92
    %v1605 = vpop.permute.xlu0 %1604
    %1606 = vrot.lane.b32.xlu0 %v1603, 92
    %v1607 = vpop.permute.xlu0 %1606
    %1608 = vrot.lane.b32.xlu0 %v1600, 92
    %v1609 = vpop.permute.xlu0 %1608
    %v1610 = vsel %vm448, %v1605, %v1607
    %v1611 = vsel %vm448, %v1607, %v1609
    %1615 = vst [vmem:[%s1497 + $0x48] sm:$0xf] %v1610
    %1616 = vst [vmem:[%s1497 + $0x50] sm:$0xf] %v1611
    %1617 = vst.msk [vmem:[%s1497 + $0x58] sm:$0xf] %vm1034, %v1609
    %v1618 = vld [vmem:[%s1154] sm:$0xff]
    %v1619 = vld [vmem:[%s1154 + $0x8] sm:$0xf]
    %v1622 = vcombine.low %v1618, %v1618
    %v1623 = vcombine.low %v1619, %v1619
    %1624 = vrot.lane.b32.xlu0 %v1622, 91
    %v1625 = vpop.permute.xlu0 %1624
    %1626 = vrot.lane.b32.xlu0 %v1618, 91
    %v1627 = vpop.permute.xlu0 %1626
    %1628 = vrot.lane.b32.xlu0 %v1623, 91
    %v1629 = vpop.permute.xlu0 %1628
    %v1630 = vsel %vm469, %v1625, %v1627
    %v1631 = vsel %vm469, %v1627, %v1629
    %1635 = vst [vmem:[%s1497 + $0x48] sm:$0xf0] %v1630
    %1636 = vst [vmem:[%s1497 + $0x50] sm:$0xf0] %v1631
    %1637 = vst.msk [vmem:[%s1497 + $0x58] sm:$0xf0] %vm1184, %v1629
    %v1638 = vld [vmem:[%s1154] sm:$0xff]
    %v1639 = vld [vmem:[%s1154 + $0x8] sm:$0xf]
    %v1642 = vcombine.high %v1638, %v1638
    %1643 = vrot.lane.b32.xlu0 %v1638, 90
    %v1644 = vpop.permute.xlu0 %1643
    %1645 = vrot.lane.b32.xlu0 %v1642, 90
    %v1646 = vpop.permute.xlu0 %1645
    %1647 = vrot.lane.b32.xlu0 %v1639, 90
    %v1648 = vpop.permute.xlu0 %1647
    %v1649 = vsel %vm490, %v1644, %v1646
    %v1650 = vsel %vm490, %v1646, %v1648
    %1654 = vst [vmem:[%s1497 + $0x60] sm:$0xf] %v1649
    %1655 = vst [vmem:[%s1497 + $0x68] sm:$0xf] %v1650
    %1656 = vst.msk [vmem:[%s1497 + $0x70] sm:$0xf] %vm1034, %v1648
    %v1657 = vld [vmem:[%s7] sm:$0xf]
    %v1658 = vld [vmem:[%s1497] sm:$0xff]
    %v1659 = vld [vmem:[%s1497 + $0x8] sm:$0xff]
    %v1660 = vld [vmem:[%s1497 + $0x10] sm:$0xff]
    %v1661 = vld [vmem:[%s1497 + $0x18] sm:$0xff]
    %v1662 = vld [vmem:[%s1497 + $0x20] sm:$0xff]
    %v1663 = vld [vmem:[%s1497 + $0x28] sm:$0xff]
    %v1664 = vld [vmem:[%s1497 + $0x30] sm:$0xff]
    %v1665 = vld [vmem:[%s1497 + $0x38] sm:$0xff]
    %v1666 = vld [vmem:[%s1497 + $0x40] sm:$0xff]
    %v1667 = vld [vmem:[%s1497 + $0x48] sm:$0xff]
    %v1668 = vld [vmem:[%s1497 + $0x50] sm:$0xff]
    %v1669 = vld [vmem:[%s1497 + $0x58] sm:$0xff]
    %v1670 = vld [vmem:[%s1497 + $0x60] sm:$0xf]
    %v1671 = vld [vmem:[%s1497 + $0x68] sm:$0xf]
    %v1672 = vld [vmem:[%s1497 + $0x70] sm:$0xf]
    %v1674 = vsel %vm1338, %v1657, 0
    %v1677 = vsel %vm1030, %v1670, 0
    %v1680 = vsel %vm1030, %v1671, 0
    %v1683 = vsel %vm1030, %v1672, 0
    %1685 = vmatprep.subr.mxu0 0.0
    %1686 = vmatpush1.msra.mxu0 0.0
    %1687 = vmatprep.subr.mxu0 0.0
    %1688 = vmatpush1.msra.mxu0 0.0
    %1689 = vmatprep.subr.mxu0 0.0
    %1690 = vmatpush1.msra.mxu0 0.0
    %1691 = vmatprep.subr.mxu0 0.0
    %1692 = vmatpush1.msra.mxu0 0.0
    %1693 = vmatprep.subr.mxu0 0.0
    %1694 = vmatpush1.msra.mxu0 0.0
    %1695 = vmatprep.subr.mxu0 0.0
    %1696 = vmatpush1.msra.mxu0 0.0
    %1697 = vmatprep.subr.mxu0 0.0
    %1698 = vmatpush1.msra.mxu0 0.0
    %1699 = vmatprep.subr.mxu0 0.0
    %1700 = vmatpush1.msra.mxu0 0.0
    %1701 = vmatprep.subr.mxu0 0.0
    %1702 = vmatpush1.msra.mxu0 0.0
    %1703 = vmatprep.subr.mxu0 0.0
    %1704 = vmatpush1.msra.mxu0 0.0
    %1705 = vmatprep.subr.mxu0 0.0
    %1706 = vmatpush1.msra.mxu0 0.0
    %1707 = vmatprep.subr.mxu0 %v1680
    %1708 = vmatpush1.msra.mxu0 %v1677
    %1709 = vmatprep.subr.mxu0 %v1668
    %1710 = vmatpush1.msra.mxu0 %v1667
    %1711 = vmatprep.subr.mxu0 %v1665
    %1712 = vmatpush1.msra.mxu0 %v1664
    %1713 = vmatprep.subr.mxu0 %v1662
    %1714 = vmatpush1.msra.mxu0 %v1661
    %1715 = vmatprep.subr.mxu0 %v1659
    %1716 = vmatpush1.msra.mxu0 %v1658
    %1717 = vmatprep.subr.mxu0 0.0
    %1718 = vmatpush2.msra.mxu0 0.0
    %1719 = vmatprep.subr.mxu0 0.0
    %1720 = vmatpush2.msra.mxu0 0.0
    %1721 = vmatprep.subr.mxu0 0.0
    %1722 = vmatpush2.msra.mxu0 0.0
    %1723 = vmatprep.subr.mxu0 0.0
    %1724 = vmatpush2.msra.mxu0 0.0
    %1725 = vmatprep.subr.mxu0 0.0
    %1726 = vmatpush2.msra.mxu0 0.0
    %1727 = vmatprep.subr.mxu0 0.0
    %1728 = vmatpush2.msra.mxu0 0.0
    %1729 = vmatprep.subr.mxu0 0.0
    %1730 = vmatpush2.msra.mxu0 0.0
    %1731 = vmatprep.subr.mxu0 0.0
    %1732 = vmatpush2.msra.mxu0 0.0
    %1733 = vmatprep.subr.mxu0 0.0
    %1734 = vmatpush2.msra.mxu0 0.0
    %1735 = vmatprep.subr.mxu0 0.0
    %1736 = vmatpush2.msra.mxu0 0.0
    %1737 = vmatprep.subr.mxu0 0.0
    %1738 = vmatpush2.msra.mxu0 0.0
    %1739 = vmatprep.subr.mxu0 0.0
    %1740 = vmatpush2.msra.mxu0 0.0
    %1741 = vmatprep.subr.mxu0 0.0
    %1742 = vmatpush2.msra.mxu0 0.0
    %1743 = vmatprep.subr.mxu0 0.0
    %1744 = vmatpush2.msra.mxu0 0.0
    %1745 = vmatprep.subr.mxu0 0.0
    %1746 = vmatpush2.msra.mxu0 0.0
    %1747 = vmatprep.subr.mxu0 0.0
    %1748 = vmatpush2.msra.mxu0 0.0
    %1749 = vmatprep.mubr.f32.mxu0 0.0
    %1750 = vmatmul.mubr.f32.gmra.mxu0 %v1674
    %v1751 = vpop.f32.mrf.mxu0
    %v1752 = vadd.f32 0.0, %v1751
    %v1753 = vpop.f32.mrf.mxu0
    %v1754 = vadd.f32 0.0, %v1753
    %1755 = vdwg.mxu0
    %1756 = vmatprep.subr.mxu0 0.0
    %1757 = vmatpush1.msra.mxu0 0.0
    %1758 = vmatprep.subr.mxu0 0.0
    %1759 = vmatpush1.msra.mxu0 0.0
    %1760 = vmatprep.subr.mxu0 0.0
    %1761 = vmatpush1.msra.mxu0 0.0
    %1762 = vmatprep.subr.mxu0 0.0
    %1763 = vmatpush1.msra.mxu0 0.0
    %1764 = vmatprep.subr.mxu0 0.0
    %1765 = vmatpush1.msra.mxu0 0.0
    %1766 = vmatprep.subr.mxu0 0.0
    %1767 = vmatpush1.msra.mxu0 0.0
    %1768 = vmatprep.subr.mxu0 0.0
    %1769 = vmatpush1.msra.mxu0 0.0
    %1770 = vmatprep.subr.mxu0 0.0
    %1771 = vmatpush1.msra.mxu0 0.0
    %1772 = vmatprep.subr.mxu0 0.0
    %1773 = vmatpush1.msra.mxu0 0.0
    %1774 = vmatprep.subr.mxu0 0.0
    %1775 = vmatpush1.msra.mxu0 0.0
    %1776 = vmatprep.subr.mxu0 0.0
    %1777 = vmatpush1.msra.mxu0 0.0
    %1778 = vmatprep.subr.mxu0 0.0
    %1779 = vmatpush1.msra.mxu0 %v1683
    %1780 = vmatprep.subr.mxu0 0.0
    %1781 = vmatpush1.msra.mxu0 %v1669
    %1782 = vmatprep.subr.mxu0 0.0
    %1783 = vmatpush1.msra.mxu0 %v1666
    %1784 = vmatprep.subr.mxu0 0.0
    %1785 = vmatpush1.msra.mxu0 %v1663
    %1786 = vmatprep.subr.mxu0 0.0
    %1787 = vmatpush1.msra.mxu0 %v1660
    %1788 = vmatprep.subr.mxu0 0.0
    %1789 = vmatpush2.msra.mxu0 0.0
    %1790 = vmatprep.subr.mxu0 0.0
    %1791 = vmatpush2.msra.mxu0 0.0
    %1792 = vmatprep.subr.mxu0 0.0
    %1793 = vmatpush2.msra.mxu0 0.0
    %1794 = vmatprep.subr.mxu0 0.0
    %1795 = vmatpush2.msra.mxu0 0.0
    %1796 = vmatprep.subr.mxu0 0.0
    %1797 = vmatpush2.msra.mxu0 0.0
    %1798 = vmatprep.subr.mxu0 0.0
    %1799 = vmatpush2.msra.mxu0 0.0
    %1800 = vmatprep.subr.mxu0 0.0
    %1801 = vmatpush2.msra.mxu0 0.0
    %1802 = vmatprep.subr.mxu0 0.0
    %1803 = vmatpush2.msra.mxu0 0.0
    %1804 = vmatprep.subr.mxu0 0.0
    %1805 = vmatpush2.msra.mxu0 0.0
    %1806 = vmatprep.subr.mxu0 0.0
    %1807 = vmatpush2.msra.mxu0 0.0
    %1808 = vmatprep.subr.mxu0 0.0
    %1809 = vmatpush2.msra.mxu0 0.0
    %1810 = vmatprep.subr.mxu0 0.0
    %1811 = vmatpush2.msra.mxu0 0.0
    %1812 = vmatprep.subr.mxu0 0.0
    %1813 = vmatpush2.msra.mxu0 0.0
    %1814 = vmatprep.subr.mxu0 0.0
    %1815 = vmatpush2.msra.mxu0 0.0
    %1816 = vmatprep.subr.mxu0 0.0
    %1817 = vmatpush2.msra.mxu0 0.0
    %1818 = vmatprep.subr.mxu0 0.0
    %1819 = vmatpush2.msra.mxu0 0.0
    %1820 = vmatprep.mubr.f32.mxu0 0.0
    %1821 = vmatmul.mubr.f32.gmra.mxu0 %v1674
    %v1822 = vpop.f32.mrf.mxu0
    %v1823 = vadd.f32 0.0, %v1822
    %v1824 = vpop.f32.mrf.mxu0
    %1825 = vdwg.mxu0
    %v1826 = vmul.f32 %v1418, %v1015
    %v1827 = vmul.f32 %v1420, %v1019
    %v1828 = vmul.f32 %v1489, %v1023
    %v1829 = vsel %vm1030, %v1826, 0.0
    %v1830 = vsel %vm1030, %v1827, 0.0
    %v1831 = vadd.f32 %v1829, %v1830
    %v1832 = vsel %vm1034, %v1828, 0.0
    %v1833 = vadd.f32 %v1831, %v1832
    %1834 = vadd.xlane.f32.xlu0 %v1833
    %v1835 = vpop.xlane.xlu0 %1834
    %v1836 = vadd.f32 %v1835, 0.0
    %v1837 = vmul.f32 %v1752, %v1015
    %v1838 = vmul.f32 %v1754, %v1019
    %v1839 = vmul.f32 %v1823, %v1023
    %v1840 = vsel %vm1030, %v1837, 0.0
    %v1841 = vsel %vm1030, %v1838, 0.0
    %v1842 = vadd.f32 %v1840, %v1841
    %v1843 = vsel %vm1034, %v1839, 0.0
    %v1844 = vadd.f32 %v1842, %v1843
    %1845 = vadd.xlane.f32.xlu0 %v1844
    %v1846 = vpop.xlane.xlu0 %1845
    %v1847 = vadd.f32 %v1836, %v1846
    %v1848 = vmul.f32 %v1418, %v1418
    %v1849 = vmul.f32 %v1420, %v1420
    %v1850 = vmul.f32 %v1489, %v1489
    %v1851 = vmul.f32 %v1848, %v1015
    %v1852 = vmul.f32 %v1849, %v1019
    %v1853 = vmul.f32 %v1850, %v1023
    %v1854 = vsel %vm1030, %v1851, 0.0
    %v1855 = vsel %vm1030, %v1852, 0.0
    %v1856 = vadd.f32 %v1854, %v1855
    %v1857 = vsel %vm1034, %v1853, 0.0
    %v1858 = vadd.f32 %v1856, %v1857
    %1859 = vadd.xlane.f32.xlu0 %v1858
    %v1860 = vpop.xlane.xlu0 %1859
    %v1861 = vadd.f32 %v1860, 0.0
    %v1862 = vmul.f32 %v1752, %v1752
    %v1863 = vmul.f32 %v1754, %v1754
    %v1864 = vmul.f32 %v1823, %v1823
    %v1865 = vmul.f32 %v1862, %v1015
    %v1866 = vmul.f32 %v1863, %v1019
    %v1867 = vmul.f32 %v1864, %v1023
    %v1868 = vsel %vm1030, %v1865, 0.0
    %v1869 = vsel %vm1030, %v1866, 0.0
    %v1870 = vadd.f32 %v1868, %v1869
    %v1871 = vsel %vm1034, %v1867, 0.0
    %v1872 = vadd.f32 %v1870, %v1871
    %1873 = vadd.xlane.f32.xlu0 %v1872
    %v1874 = vpop.xlane.xlu0 %1873
    %v1875 = vadd.f32 %v1861, %v1874
    %v1876 = vmul.f32 %v1847, 0.001953125
    %v1877 = vmul.f32 %v1875, 0.001953125
    %v1878 = vmul.f32 %v1876, %v1876
    %v1879 = vsub.f32 %v1877, %v1878
    %v1880 = vadd.f32 %v1879, 1e-05
    %v1881 = vrsqrt.pop %v1880
    %v1882 = vld [vmem:[%s8] sm:$0xf]
    %v1883 = vmul.f32 %v1881, %v1882
    %v1884 = vld [vmem:[%s9] sm:$0xf]
    %v1885 = vmul.f32 %v1876, %v1883
    %v1886 = vsub.f32 %v1884, %v1885
    %1888 = vset.pattern.permute.xlu0 0
    %1889 = vperm.xlu0 %1888, %v1883
    %v1890 = vpop.permute.xlu0 %1889
    %v1892 = vmul.f32 %v1418, %v1890
    %v1893 = vmul.f32 %v1420, %v1890
    %v1894 = vmul.f32 %v1489, %v1890
    %1896 = vset.pattern.permute.xlu0 0
    %1897 = vperm.xlu0 %1896, %v1886
    %v1898 = vpop.permute.xlu0 %1897
    %v1900 = vadd.f32 %v1892, %v1898
    %v1901 = vadd.f32 %v1893, %v1898
    %v1902 = vadd.f32 %v1894, %v1898
    %v1903 = vmax.f32 %v1900, 0.0
    %v1904 = vmax.f32 %v1901, 0.0
    %v1905 = vmax.f32 %v1902, 0.0
    %v1906 = vmul.f32 %v1903, %v1015
    %v1907 = vmul.f32 %v1904, %v1019
    %v1908 = vmul.f32 %v1905, %v1023
    %v1909 = vmul.f32 %v1752, %v1890
    %v1910 = vmul.f32 %v1754, %v1890
    %v1911 = vmul.f32 %v1823, %v1890
    %v1912 = vadd.f32 %v1909, %v1898
    %v1913 = vadd.f32 %v1910, %v1898
    %v1914 = vadd.f32 %v1911, %v1898
    %v1915 = vmax.f32 %v1912, 0.0
    %v1916 = vmax.f32 %v1913, 0.0
    %v1917 = vmax.f32 %v1914, 0.0
    %v1918 = vmul.f32 %v1915, %v1015
    %v1919 = vmul.f32 %v1916, %v1019
    %v1920 = vmul.f32 %v1917, %v1023
    %v1923 = vcombine.low %v1906, %v1907
    %1925 = vst [vmem:[#allocation11] sm:$0xff] %v1923
    %1926 = vst.msk [vmem:[#allocation11 + $0x8] sm:$0xf] %vm1034, %v1908
    %v1929 = vcombine.low %v1918, %v1919
    %s1931 = scalar_lea.vmem [#allocation11], 12
    %1932 = vst [vmem:[%s1931] sm:$0xff] %v1929
    %1933 = vst.msk [vmem:[%s1931 + $0x8] sm:$0xf] %vm1034, %v1920
    // Predicated region
    $region50: #{tpu_custom_call.1} parent=1 // pred_check
      _
    $region51: #{tpu_custom_call.1} parent=1 // pred_check_branch
      %1935 = sbr.rel (0) target = $region53
    $region52: #{tpu_custom_call.1} parent=1 // pred_region
      %s1937 = ssub.s32 384, 384
      %1938 = vsyncadd [#allocation8], %s1937
      %s1939 = sshll.u32 [#allocation11], 4
      %s1940 = int_to_ptr.vmem [resolvable:$true] %s1939
      %1945 = dma.vmem_to_hbm [thread:$0]  %s1940, 384, %s10, [#allocation8], 192, 192, 12
    $region53: #{tpu_custom_call.1} parent=1 // pred_fallthru
      _
    // Predicated region
    $region54: #{tpu_custom_call.1} parent=1 // pred_check
      _
    $region55: #{tpu_custom_call.1} parent=1 // pred_check_branch
      %1947 = sbr.rel (0) target = $region57
    $region56: #{tpu_custom_call.1} parent=1 // pred_region
      %1948 = dma.done [#allocation8], 384
    $region57: #{tpu_custom_call.1} parent=1 // pred_fallthru
      _
    %1949 = vsyncpa [#allocation7], 1
    %1950 = vsyncpa [#allocation10], 1
    %1951 = vsyncpa [#allocation8], 1

</llo_original>
